<compile_context>
chip_gen: v5e
topology: v5e:2x2
jax: 0.10.0
libtpu: 0.0.40
codegen_flags: <defaults>
</compile_context>

<pallas_src>
import math

import jax
import jax.numpy as jnp
from jax.experimental import pallas as pl
from jax.experimental.pallas import tpu as pltpu


# ----------------------------------------------------------------------------- #
# Chip-aware sizing helpers                                                      #
# ----------------------------------------------------------------------------- #
def _device_kind():
    try:
        return jax.devices()[0].device_kind.lower()
    except Exception:  # pragma: no cover
        return ""


def _vmem_capacity_bytes():
    """Physical VMEM per TensorCore: 128 MiB on v5e/v6e, 64 MiB on v7x (and as a
    conservative default for unknown parts)."""
    kind = _device_kind()
    if ("v5" in kind) or ("v6" in kind):
        return 128 * 2 ** 20
    return 64 * 2 ** 20


def _default_acc_dtype():
    """Dtype of the dominant (HW, TQ) one-hot/select chain: bf16 on chips with a
    bf16 VPU (v6e / v7x, halves vreg + vld/vst traffic), f32 on v5e and older
    (bf16 elementwise there only adds converts)."""
    kind = _device_kind()
    if any(tag in kind for tag in ("v2", "v3", "v4", "v5")):
        return jnp.float32
    return jnp.bfloat16


def _vmem_limit_bytes(est_bytes):
    """Scoped-VMEM request: 2x the estimate, clamped to [32 MiB, ~0.8 * chip VMEM]
    (leaves headroom below the 64 MiB v7x physical cap; ~105 MiB on v5e/v6e)."""
    hi = int(0.82 * _vmem_capacity_bytes())
    return int(min(max(2 * est_bytes, 32 * 2 ** 20), hi))


# ----------------------------------------------------------------------------- #
# Pallas kernel 1: 3x3 "same" convolution, channel-last (NHWC)                   #
# ----------------------------------------------------------------------------- #
def conv3x3(x, w, b, *, compute_dtype=jnp.bfloat16, out_dtype=jnp.float32):
    """x: (B, H, W, Cin); w: (Cout, Cin, 3, 3) (PyTorch layout); b: (Cout,).
    Returns (B, H, W, Cout) in `out_dtype`; MXU matmuls run in `compute_dtype`
    with f32 accumulation."""
    B, H, W, Cin = x.shape
    Cout = w.shape[0]
    # aligned lane-concat of the 3 dx taps only when Cin is a multiple of 128
    fuse_dx = (Cin % 128 == 0)

    xp = jnp.pad(x, ((0, 0), (1, 1), (1, 1), (0, 0))).astype(compute_dtype)
    wt = jnp.transpose(w, (2, 3, 1, 0)).astype(compute_dtype)          # (3, 3, Cin, Cout)
    if fuse_dx:
        wt = wt.reshape(3, 3 * Cin, Cout)                              # (ky, kx*Cin, Cout)
    bt = b.reshape(1, Cout).astype(jnp.float32)

    def kernel(x_ref, w_ref, b_ref, o_ref):
        acc = jnp.zeros((H * W, Cout), jnp.float32)
        if fuse_dx:
            # 3 (H*W, 3*Cin) x (3*Cin, Cout) MXU matmuls: dx taps fused along K.
            for dy in range(3):
                row = x_ref[0, dy:dy + H]                              # (H, W+2, Cin)
                taps = jnp.concatenate(
                    [row[:, dx:dx + W, :].reshape(H * W, Cin) for dx in range(3)],
                    axis=1)                                            # (H*W, 3*Cin)
                acc = acc + jnp.dot(taps, w_ref[dy],
                                    preferred_element_type=jnp.float32)
        else:
            # fallback: 9 shifted (H*W, Cin) x (Cin, Cout) matmuls accumulated in f32.
            for dy in range(3):
                for dx in range(3):
                    patch = x_ref[0, dy:dy + H, dx:dx + W, :].reshape(H * W, Cin)
                    acc = acc + jnp.dot(patch, w_ref[dy, dx],
                                        preferred_element_type=jnp.float32)
        acc = acc + b_ref[...]                                          # (1, Cout) broadcast
        o_ref[0] = acc.reshape(H, W, Cout).astype(out_dtype)

    isz = jnp.dtype(compute_dtype).itemsize
    kw = 3 * Cin if fuse_dx else Cin
    est = (2 * (H + 2) * (W + 2) * Cin * isz            # double-buffered input block
           + 9 * Cin * Cout * isz + Cout * 4            # weights + bias (resident)
           + 2 * H * W * Cout * 4                       # double-buffered output block
           + H * W * (kw * isz + 2 * Cout * 4))         # patch/concat + accumulator temps

    w_spec = (pl.BlockSpec((3, 3 * Cin, Cout), lambda i: (0, 0, 0)) if fuse_dx
              else pl.BlockSpec((3, 3, Cin, Cout), lambda i: (0, 0, 0, 0)))

    # TODO(synk): at production resolutions on v7x (64 MiB VMEM) this whole-image block
    # should become a row-tiled grid with a 1-row halo (manual DMA); the shapes used by
    # this module fit comfortably in a single block, so row tiling is not implemented.
    return pl.pallas_call(
        kernel,
        out_shape=jax.ShapeDtypeStruct((B, H, W, Cout), out_dtype),
        grid_spec=pltpu.PrefetchScalarGridSpec(
            num_scalar_prefetch=0,
            grid=(B,),
            in_specs=[
                pl.BlockSpec((1, H + 2, W + 2, Cin), lambda i: (i, 0, 0, 0)),
                w_spec,
                pl.BlockSpec((1, Cout), lambda i: (0, 0)),
            ],
            out_specs=pl.BlockSpec((1, H, W, Cout), lambda i: (i, 0, 0, 0)),
        ),
        compiler_params=pltpu.CompilerParams(
            dimension_semantics=("parallel",),
            vmem_limit_bytes=_vmem_limit_bytes(est)),
    )(xp, wt, bt)


# ----------------------------------------------------------------------------- #
# Pallas kernel 2: multi-scale deformable attention core                         #
#   value : (N, M, L, D, HW)    loc_x/loc_y/attn : (N, M, L*P, Lq)                #
#   out   : (N, M*D, Lq) float32                                                  #
# ----------------------------------------------------------------------------- #
def _core_vmem_est(TQ, HW, LP, D, L, v_isz, acc_isz):
    return (2 * L * D * HW * v_isz           # resident (double-buffered) value block
            + 3 * 2 * LP * TQ * 4            # loc_x / loc_y / attn blocks
            + 2 * D * TQ * 4                 # output block
            + LP * TQ * 4                    # softmax scratch
            + 2 * HW * TQ * 4                # hoisted row/col id planes
            + 4 * HW * TQ * acc_isz          # A carry + ~3 live (HW, TQ) temporaries
            + D * TQ * 4)                    # f32 per-head accumulator


def _pick_q_tile(Lq, HW, LP, D, L, v_isz, acc_isz, cap):
    """Largest TQ in {512, 256, 128} dividing Lq whose estimated per-step footprint
    (including the in-kernel (HW,TQ) temporaries) stays well under the chip's VMEM."""
    budget = int(0.55 * cap)
    for cand in (512, 256, 128):
        if Lq % cand == 0 and _core_vmem_est(cand, HW, LP, D, L, v_isz, acc_isz) <= budget:
            return cand
    for cand in (256, 128):
        if Lq % cand == 0:
            return cand
    return Lq   # full-extent block (legal; masked stores are a perf nit only)


def msdeform_core(value, loc_x, loc_y, attn, H, W, *,
                  value_dtype=jnp.bfloat16, acc_dtype=None, q_tile=None):
    N, M, L, D, HW = value.shape
    assert HW == H * W
    LP = loc_x.shape[2]
    P = LP // L
    Lq = loc_x.shape[-1]
    C = M * D
    assert D % 8 == 0, "head dim must be a multiple of 8 for the (1, D, TQ) output blocks"

    if acc_dtype is None:
        acc_dtype = _default_acc_dtype()
    v_isz = jnp.dtype(value_dtype).itemsize
    a_isz = jnp.dtype(acc_dtype).itemsize
    cap = _vmem_capacity_bytes()

    TQ = q_tile if q_tile is not None else _pick_q_tile(Lq, HW, LP, D, L, v_isz, a_isz, cap)
    assert Lq % TQ == 0
    n_q = Lq // TQ

    value = value.astype(value_dtype)
    loc_x = loc_x.astype(jnp.float32)
    loc_y = loc_y.astype(jnp.float32)
    attn = attn.astype(jnp.float32)

    def kernel(v_ref, lx_ref, ly_ref, a_ref, o_ref, sm_scr):
        # --- softmax over the L*P sampling slots of this head (once per grid step).
        #     NOTE: approx reciprocal (EUP) -> ~1e-3 relative error on the weights.
        logits = a_ref[0, 0]                                            # (LP, TQ) f32
        mx = jnp.max(logits, axis=0, keepdims=True)
        e = jnp.exp(logits - mx)
        sm_scr[...] = e * pl.reciprocal(jnp.sum(e, axis=0, keepdims=True), approx=True)

        # --- hoisted row / col ids of the flattened HW grid (shared compare operands)
        lin = jax.lax.broadcasted_iota(jnp.int32, (HW, 1), 0).astype(jnp.float32)
        rowf = jnp.floor(lin / float(W))
        colf = lin - rowf * float(W)
        row_ids = jnp.broadcast_to(rowf.astype(jnp.int32), (HW, TQ))
        col_ids = jnp.broadcast_to(colf.astype(jnp.int32), (HW, TQ))

        acc = jnp.zeros((D, TQ), jnp.float32)                           # per-head f32 accumulator
        for l in range(L):

            def point_body(p, A):
                r = l * P + p
                lx = lx_ref[0, 0, pl.ds(r, 1), :]                       # (1, TQ) f32
                ly = ly_ref[0, 0, pl.ds(r, 1), :]
                aw = sm_scr[pl.ds(r, 1), :]
                # grid_sample(align_corners=False) pixel coordinates
                x = lx * W - 0.5
                y = ly * H - 0.5
                x0f = jnp.floor(x)
                y0f = jnp.floor(y)
                fx = x - x0f
                fy = y - y0f
                x0 = x0f.astype(jnp.int32)
                y0 = y0f.astype(jnp.int32)
                # separable bilinear corner weights (attention weight folded into x);
                # out-of-range corners never match row/col ids -> zeros padding for free.
                ax0 = ((1.0 - fx) * aw).astype(acc_dtype)
                ax1 = (fx * aw).astype(acc_dtype)
                ay0 = (1.0 - fy).astype(acc_dtype)
                ay1 = fy.astype(acc_dtype)
                Yw = jnp.where(row_ids == y0, ay0,
                               jnp.where(row_ids == y0 + 1, ay1, 0.0))
                Xw = jnp.where(col_ids == x0, ax0,
                               jnp.where(col_ids == x0 + 1, ax1, 0.0))
                return A + Yw * Xw

            A = jax.lax.fori_loop(0, P, point_body,
                                  jnp.zeros((HW, TQ), acc_dtype), unroll=True)
            v_l = v_ref[0, 0, l]                                        # (D, HW)
            if A.dtype != v_l.dtype:
                A = A.astype(v_l.dtype)
            # per-level MXU contraction interleaved with the next level's VALU work
            acc = acc + jnp.dot(v_l, A, preferred_element_type=jnp.float32)

        o_ref[0] = acc

    est = _core_vmem_est(TQ, HW, LP, D, L, v_isz, a_isz)

    return pl.pallas_call(
        kernel,
        out_shape=jax.ShapeDtypeStruct((N, C, Lq), jnp.float32),
        grid_spec=pltpu.PrefetchScalarGridSpec(
            num_scalar_prefetch=0,
            grid=(N, M, n_q),
            in_specs=[
                pl.BlockSpec((1, 1, L, D, HW), lambda n, m, q: (n, m, 0, 0, 0)),  # resident over q
                pl.BlockSpec((1, 1, LP, TQ), lambda n, m, q: (n, m, 0, q)),
                pl.BlockSpec((1, 1, LP, TQ), lambda n, m, q: (n, m, 0, q)),
                pl.BlockSpec((1, 1, LP, TQ), lambda n, m, q: (n, m, 0, q)),
            ],
            out_specs=pl.BlockSpec((1, D, TQ), lambda n, m, q: (n, m, q)),
            scratch_shapes=[pltpu.VMEM((LP, TQ), jnp.float32)],
        ),
        compiler_params=pltpu.CompilerParams(
            dimension_semantics=("parallel", "parallel", "parallel"),
            vmem_limit_bytes=_vmem_limit_bytes(est)),
    )(value, loc_x, loc_y, attn)


# Pure-JAX reference of the core (same math) — used only for a sanity check.
def msdeform_core_ref(value, loc_x, loc_y, attn, H, W, M, L, P):
    # value: (N, L, C, HW), loc: (N, M*L*P, Lq), attn: (N, M, L*P, Lq)
    N, _, C, HW = value.shape
    Lq = loc_x.shape[-1]
    D = C // M
    attn_sm = jax.nn.softmax(attn, axis=2)
    iota = jnp.arange(HW, dtype=jnp.int32)[None, :, None]
    out = jnp.zeros((N, C, Lq), jnp.float32)
    for m in range(M):
        head = jnp.zeros((N, D, Lq), jnp.float32)
        for l in range(L):
            A = jnp.zeros((N, HW, Lq), jnp.float32)
            for p in range(P):
                r = (m * L + l) * P + p
                x = loc_x[:, r] * W - 0.5
                y = loc_y[:, r] * H - 0.5
                aw = attn_sm[:, m, l * P + p]
                x0 = jnp.floor(x)
                y0 = jnp.floor(y)
                fx = x - x0
                fy = y - y0
                for cx, cy, cw in ((x0, y0, (1 - fx) * (1 - fy)),
                                   (x0 + 1, y0, fx * (1 - fy)),
                                   (x0, y0 + 1, (1 - fx) * fy),
                                   (x0 + 1, y0 + 1, fx * fy)):
                    valid = ((cx >= 0) & (cx < W) & (cy >= 0) & (cy < H)).astype(jnp.float32)
                    wq = (aw * cw * valid)[:, None, :]
                    idx = (cy * W + cx).astype(jnp.int32)[:, None, :]
                    A = A + wq * (iota == idx).astype(jnp.float32)
            v_l = value[:, l, m * D:(m + 1) * D, :]
            head = head + jnp.einsum('ndh,nhq->ndq', v_l, A,
                                     precision=jax.lax.Precision.HIGHEST)
        out = out.at[:, m * D:(m + 1) * D, :].set(head)
    return out


# ----------------------------------------------------------------------------- #
# Plain-JAX glue: backward warp + flow-guided offsets (tiny, gather-based)       #
# ----------------------------------------------------------------------------- #
def _bilinear_sample_nchw(img, vx, vy):
    """img: (N, C, H, W); vx, vy: (N, H, W) pixel coords; zeros padding."""
    N, C, H, W = img.shape
    x0 = jnp.floor(vx)
    y0 = jnp.floor(vy)
    fx = vx - x0
    fy = vy - y0
    x0i = x0.astype(jnp.int32)
    y0i = y0.astype(jnp.int32)
    flat = img.reshape(N, C, H * W)

    def gather(yy, xx):
        valid = ((xx >= 0) & (xx < W) & (yy >= 0) & (yy < H)).astype(img.dtype)
        xc = jnp.clip(xx, 0, W - 1)
        yc = jnp.clip(yy, 0, H - 1)
        idx = (yc * W + xc).reshape(N, 1, H * W)
        g = jnp.take_along_axis(flat, jnp.broadcast_to(idx, (N, C, H * W)), axis=2)
        return g.reshape(N, C, H, W) * valid[:, None]

    w00 = ((1 - fx) * (1 - fy))[:, None]
    w10 = (fx * (1 - fy))[:, None]
    w01 = ((1 - fx) * fy)[:, None]
    w11 = (fx * fy)[:, None]
    return (w00 * gather(y0i, x0i) + w10 * gather(y0i, x0i + 1)
            + w01 * gather(y0i + 1, x0i) + w11 * gather(y0i + 1, x0i + 1))


def warp(x, flo):
    # TODO(synk): `warp` is not defined in the provided source; standard bilinear
    # backward-warp (grid + flow, zeros padding) is used.
    N, C, H, W = x.shape
    gx = jnp.arange(W, dtype=jnp.float32)[None, None, :]
    gy = jnp.arange(H, dtype=jnp.float32)[None, :, None]
    vx = gx + flo[:, 0]
    vy = gy + flo[:, 1]
    return _bilinear_sample_nchw(x, vx, vy)


def flow_guid_offset(flow_forward, flow_backward, offset, h, w):
    N, THW, heads, n_levels, points, _ = offset.shape
    hw = h * w
    off = offset.reshape(N, n_levels, hw, heads, n_levels, points, 2)
    chunks = [off[:, i:i + 1] for i in range(n_levels)]

    ff01, ff12, ff23, ff34 = (flow_forward[:, i] for i in range(4))
    ff02 = ff01 + warp(ff12, ff01)
    ff03 = ff02 + warp(ff23, ff02)
    ff04 = ff03 + warp(ff34, ff03)
    ff13 = ff12 + warp(ff23, ff12)
    ff14 = ff13 + warp(ff34, ff13)
    ff24 = ff23 + warp(ff34, ff23)

    fb10, fb21, fb32, fb43 = (flow_backward[:, i] for i in range(4))
    fb42 = fb43 + warp(fb32, fb43)
    fb41 = fb42 + warp(fb21, fb42)
    fb40 = fb41 + warp(fb10, fb41)
    fb31 = fb32 + warp(fb21, fb32)
    fb30 = fb31 + warp(fb10, fb31)
    fb20 = fb21 + warp(fb10, fb21)

    def flat(f):  # (N, 2, h, w) -> (N, hw, 2)
        return jnp.transpose(f, (0, 2, 3, 1)).reshape(f.shape[0], -1, 2)

    z = jnp.zeros_like(flat(ff01))
    stack0 = jnp.stack([z, flat(ff01), flat(ff02), flat(ff03), flat(ff04)], axis=2)
    stack1 = jnp.stack([flat(fb10), z, flat(ff12), flat(ff13), flat(ff14)], axis=2)
    stack2 = jnp.stack([flat(fb20), flat(fb21), z, flat(ff23), flat(ff24)], axis=2)
    stack3 = jnp.stack([flat(fb30), flat(fb31), flat(fb32), z, flat(ff34)], axis=2)
    stack4 = stack3  # NOTE: reproduces reference code (chunk4 reuses chunk3's flows)
    stacks = [stack0, stack1, stack2, stack3, stack4]

    new_chunks = [c + s[:, None, :, None, :, None, :] for c, s in zip(chunks, stacks)]
    out = jnp.concatenate(new_chunks, axis=1).reshape(N, THW, heads, n_levels, points, 2)
    return out


# ----------------------------------------------------------------------------- #
# MSDeformAttn forward                                                           #
# ----------------------------------------------------------------------------- #
def msdeform_attn_forward(params, query, reference_points, input_flatten,
                          flow_forward, flow_backward, input_padding_mask=None,
                          compute_dtype=jnp.bfloat16):
    bs, t, c, h, w = query.shape
    M, L, P = params["n_heads"], params["n_levels"], params["n_points"]
    assert t == L and c % M == 0
    D = c // M
    hw = h * w
    Lq = t * hw

    # single NCHW -> NHWC layout change at the module boundary
    q_nhwc = jnp.transpose(query.reshape(bs * t, c, h, w), (0, 2, 3, 1))
    v_nhwc = jnp.transpose(input_flatten.reshape(bs * t, c, h, w), (0, 2, 3, 1))

    value = conv3x3(v_nhwc, params["value_proj_w"], params["value_proj_b"],
                    compute_dtype=compute_dtype, out_dtype=compute_dtype)   # (bs*t, h, w, c)

    # fused sampling_offsets + attention_weights conv on the query features,
    # Cout zero-padded to a multiple of 128 for lane-dense output stores.
    so_out = M * L * P * 2
    aw_out = M * L * P
    qo_out = so_out + aw_out
    pad = (-qo_out) % 128
    w_cat = jnp.concatenate([params["sampling_offsets_w"],
                             params["attention_weights_w"]], axis=0)
    b_cat = jnp.concatenate([params["sampling_offsets_b"],
                             params["attention_weights_b"]], axis=0)
    if pad:
        w_cat = jnp.pad(w_cat, ((0, pad), (0, 0), (0, 0), (0, 0)))
        b_cat = jnp.pad(b_cat, ((0, pad),))
    qo = conv3x3(q_nhwc, w_cat, b_cat, compute_dtype=compute_dtype)          # (bs*t, h, w, >=qo_out)
    samp_off = qo[..., :so_out]
    attn_log = qo[..., so_out:qo_out]

    # channel-last -> (bs, Lq, C') is a pure reshape (no HBM transpose).
    value_f = value.reshape(bs, Lq, c)
    off_f = samp_off.reshape(bs, Lq, so_out)
    attn_f = attn_log.reshape(bs, Lq, aw_out)

    if input_padding_mask is not None:
        value_f = jnp.where(input_padding_mask[..., None], 0.0, value_f)

    offsets = off_f.reshape(bs, Lq, M, L, P, 2)
    offsets = flow_guid_offset(flow_forward, flow_backward, offsets, h, w)

    normalizer = jnp.array([[w, h]] * L, dtype=jnp.float32)                  # (L, 2) = (W_l, H_l)
    sampling_locations = (reference_points[:, :, None, :, None, :]
                          + offsets / normalizer[None, None, None, :, None, :])

    # core inputs: lane-dense (.., Lq) slabs; value as (bs, M, L, D, hw).
    # TODO(synk): these transposes are extra HBM round trips; if they show up in a
    # profile, emit the (.., Lq)-last layout directly from the conv's out BlockSpec.
    value_k = jnp.transpose(value_f.reshape(bs, L, hw, M, D), (0, 3, 1, 4, 2))
    loc_x = jnp.transpose(sampling_locations[..., 0], (0, 2, 3, 4, 1)).reshape(bs, M, L * P, Lq)
    loc_y = jnp.transpose(sampling_locations[..., 1], (0, 2, 3, 4, 1)).reshape(bs, M, L * P, Lq)
    attn_k = jnp.transpose(attn_f.reshape(bs, Lq, M, L * P), (0, 2, 3, 1))   # (bs, M, LP, Lq)

    out = msdeform_core(value_k, loc_x, loc_y, attn_k, h, w,
                        value_dtype=compute_dtype)                           # (bs, c, Lq)

    out_nhwc = jnp.transpose(out.reshape(bs, c, t, hw), (0, 2, 3, 1)).reshape(bs * t, h, w, c)
    out_nhwc = conv3x3(out_nhwc, params["output_proj_w"], params["output_proj_b"],
                       compute_dtype=compute_dtype)
    return jnp.transpose(out_nhwc, (0, 3, 1, 2))                             # (bs*t, C, h, w)


# ----------------------------------------------------------------------------- #
# Deterministic parameter initialization (mirrors _reset_parameters)             #
# ----------------------------------------------------------------------------- #
def init_params(key, d_model, n_levels, n_heads, n_points):
    k1, k2 = jax.random.split(key)

    def xavier_conv(k, cout, cin, ksz=3):
        fan_in = cin * ksz * ksz
        fan_out = cout * ksz * ksz
        a = math.sqrt(6.0 / (fan_in + fan_out))
        return jax.random.uniform(k, (cout, cin, ksz, ksz), jnp.float32, -a, a)

    so_out = n_heads * n_levels * n_points * 2
    aw_out = n_heads * n_levels * n_points

    thetas = jnp.arange(n_heads, dtype=jnp.float32) * (2.0 * math.pi / n_heads)
    grid_init = jnp.stack([jnp.cos(thetas), jnp.sin(thetas)], axis=-1)
    grid_init = grid_init / jnp.max(jnp.abs(grid_init), axis=-1, keepdims=True)
    grid_init = jnp.tile(grid_init.reshape(n_heads, 1, 1, 2), (1, n_levels, n_points, 1))
    grid_init = grid_init * jnp.arange(1, n_points + 1, dtype=jnp.float32).reshape(1, 1, n_points, 1)

    return dict(
        n_heads=n_heads, n_levels=n_levels, n_points=n_points,
        sampling_offsets_w=jnp.zeros((so_out, d_model, 3, 3), jnp.float32),
        sampling_offsets_b=grid_init.reshape(-1),
        attention_weights_w=jnp.zeros((aw_out, d_model, 3, 3), jnp.float32),
        attention_weights_b=jnp.zeros((aw_out,), jnp.float32),
        value_proj_w=xavier_conv(k1, d_model, d_model),
        value_proj_b=jnp.zeros((d_model,), jnp.float32),
        output_proj_w=xavier_conv(k2, d_model, d_model),
        output_proj_b=jnp.zeros((d_model,), jnp.float32),
    )


if __name__ == "__main__":
    # ---- kernel sanity checks against plain-JAX references ----
    kc = jax.random.split(jax.random.PRNGKey(1), 10)

    # conv3x3, 9-tap path (Cin not a multiple of 128)
    xc = jax.random.normal(kc[0], (3, 8, 8, 16), jnp.float32)
    wc = 0.1 * jax.random.normal(kc[1], (24, 16, 3, 3), jnp.float32)
    bc = 0.1 * jax.random.normal(kc[2], (24,), jnp.float32)
    conv_out = conv3x3(xc, wc, bc)
    conv_ref = jax.lax.conv_general_dilated(
        xc.astype(jnp.bfloat16), wc.astype(jnp.bfloat16), (1, 1), ((1, 1), (1, 1)),
        dimension_numbers=("NHWC", "OIHW", "NHWC"),
        preferred_element_type=jnp.float32) + bc[None, None, None, :]
    assert jnp.allclose(conv_out, conv_ref, atol=5e-3, rtol=5e-3), "conv3x3 (9-tap) mismatch"

    # conv3x3, fused-dx path (Cin % 128 == 0)
    xf = jax.random.normal(kc[3], (2, 8, 8, 128), jnp.float32)
    wf = 0.05 * jax.random.normal(kc[4], (32, 128, 3, 3), jnp.float32)
    bf = 0.1 * jax.random.normal(kc[5], (32,), jnp.float32)
    convf_out = conv3x3(xf, wf, bf)
    convf_ref = jax.lax.conv_general_dilated(
        xf.astype(jnp.bfloat16), wf.astype(jnp.bfloat16), (1, 1), ((1, 1), (1, 1)),
        dimension_numbers=("NHWC", "OIHW", "NHWC"),
        preferred_element_type=jnp.float32) + bf[None, None, None, :]
    assert jnp.allclose(convf_out, convf_ref, atol=5e-3, rtol=5e-3), "conv3x3 (fused) mismatch"

    # deformable-attention core (f32 path: tight; low-precision path: bf16 tolerance)
    Nc, Mc, Lc, Pc, Hc, Wc, Dc = 1, 2, 3, 2, 8, 8, 8
    Cc, HWc = Mc * Dc, Hc * Wc
    Lqc = Lc * HWc
    vv = jax.random.normal(kc[6], (Nc, Lc, Cc, HWc), jnp.float32)
    ll = jax.random.uniform(kc[7], (Nc, 2, Mc * Lc * Pc, Lqc), jnp.float32, -0.1, 1.1)
    aa = jax.random.normal(kc[8], (Nc, Mc, Lc * Pc, Lqc), jnp.float32)

    vv_k = jnp.transpose(vv.reshape(Nc, Lc, Mc, Dc, HWc), (0, 2, 1, 3, 4))   # (N, M, L, D, HW)
    lx_k = ll[:, 0].reshape(Nc, Mc, Lc * Pc, Lqc)
    ly_k = ll[:, 1].reshape(Nc, Mc, Lc * Pc, Lqc)

    core_ref = msdeform_core_ref(vv, ll[:, 0], ll[:, 1], aa, Hc, Wc, Mc, Lc, Pc)
    core_f32 = msdeform_core(vv_k, lx_k, ly_k, aa, Hc, Wc,
                             value_dtype=jnp.float32, acc_dtype=jnp.float32)
    assert jnp.allclose(core_f32, core_ref, atol=2e-2, rtol=2e-2), "core (f32) mismatch"
    core_lp = msdeform_core(vv_k, lx_k, ly_k, aa, Hc, Wc)    # bf16 value, chip-default A dtype
    assert jnp.allclose(core_lp, core_ref, atol=6e-2, rtol=6e-2), "core (low-precision) mismatch"

    # ---- full forward at small shapes ----
    key = jax.random.PRNGKey(0)
    bs, t, d_model, h, w = 1, 5, 32, 8, 8
    n_levels, n_heads, n_points = 5, 4, 2
    keys = jax.random.split(key, 6)

    params = init_params(keys[0], d_model, n_levels, n_heads, n_points)
    query = jax.random.normal(keys[1], (bs, t, d_model, h, w), jnp.float32)
    input_flatten = jax.random.normal(keys[2], (bs, t, d_model, h, w), jnp.float32)
    Lq = t * h * w
    reference_points = jax.random.uniform(keys[3], (bs, Lq, n_levels, 2), jnp.float32)
    flow_forward = 0.5 * jax.random.normal(keys[4], (bs, 4, 2, h, w), jnp.float32)
    flow_backward = 0.5 * jax.random.normal(keys[5], (bs, 4, 2, h, w), jnp.float32)

    out = msdeform_attn_forward(params, query, reference_points, input_flatten,
                                flow_forward, flow_backward)
    out = jax.block_until_ready(out)
    assert out.shape == (bs * t, d_model, h, w)
    assert bool(jnp.all(jnp.isfinite(out)))
    print("KERNEL_OK")
</pallas_src>

<mosaic_0001>
module attributes {stable_mosaic.version = 11 : i64} {
  func.func @kernel(%arg0: i32, %arg1: memref<1x10x10x16xbf16, #tpu.memory_space<vmem>>, %arg2: memref<3x3x16x24xbf16, #tpu.memory_space<vmem>>, %arg3: memref<1x24xf32, #tpu.memory_space<vmem>>, %arg4: memref<1x8x8x24xf32, #tpu.memory_space<vmem>>) attributes {dimension_semantics = [#tpu.dimension_semantics<parallel>], iteration_bounds = array<i64: 3>, scalar_prefetch = 0 : i64, scratch_operands = 0 : i64, tpu.core_type = #tpu.core_type<tc>, window_params = [{transform_indices = @transform_0, window_bounds = array<i64: 1, 10, 10, 16>}, {pipeline_mode = #tpu.pipeline_mode<synchronous>, transform_indices = @transform_1, window_bounds = array<i64: 3, 3, 16, 24>}, {pipeline_mode = #tpu.pipeline_mode<synchronous>, transform_indices = @transform_2, window_bounds = array<i64: 1, 24>}, {transform_indices = @transform_3, window_bounds = array<i64: 1, 8, 8, 24>}]} {
    %cst = arith.constant 0.000000e+00 : f32
    %0 = vector.broadcast %cst : f32 to vector<64x24xf32>
    %c0 = arith.constant 0 : index
    %c0_0 = arith.constant 0 : index
    %c0_1 = arith.constant 0 : index
    %c0_2 = arith.constant 0 : index
    %1 = vector.load %arg1[%c0, %c0_0, %c0_1, %c0_2] : memref<1x10x10x16xbf16, #tpu.memory_space<vmem>>, vector<1x8x8x16xbf16>
    %2 = vector.shape_cast %1 : vector<1x8x8x16xbf16> to vector<8x8x16xbf16>
    %3 = vector.shape_cast %2 : vector<8x8x16xbf16> to vector<64x16xbf16>
    %c0_3 = arith.constant 0 : index
    %c0_4 = arith.constant 0 : index
    %c0_5 = arith.constant 0 : index
    %c0_6 = arith.constant 0 : index
    %4 = vector.load %arg2[%c0_3, %c0_4, %c0_5, %c0_6] : memref<3x3x16x24xbf16, #tpu.memory_space<vmem>>, vector<1x1x16x24xbf16>
    %5 = vector.shape_cast %4 : vector<1x1x16x24xbf16> to vector<16x24xbf16>
    %cst_7 = arith.constant dense<0.000000e+00> : vector<64x24xf32>
    %6 = tpu.matmul %3, %5, %cst_7 {dimension_numbers = #tpu.dot_dimension_numbers<[1], [0], [0], [1], [0, 0, 1, 1], [], []>} : vector<64x16xbf16>, vector<16x24xbf16>, vector<64x24xf32> -> vector<64x24xf32>
    %7 = arith.addf %0, %6 : vector<64x24xf32>
    %c0_8 = arith.constant 0 : index
    %c0_9 = arith.constant 0 : index
    %c1 = arith.constant 1 : index
    %c0_10 = arith.constant 0 : index
    %8 = vector.load %arg1[%c0_8, %c0_9, %c1, %c0_10] : memref<1x10x10x16xbf16, #tpu.memory_space<vmem>>, vector<1x8x8x16xbf16>
    %9 = vector.shape_cast %8 : vector<1x8x8x16xbf16> to vector<8x8x16xbf16>
    %10 = vector.shape_cast %9 : vector<8x8x16xbf16> to vector<64x16xbf16>
    %c0_11 = arith.constant 0 : index
    %c1_12 = arith.constant 1 : index
    %c0_13 = arith.constant 0 : index
    %c0_14 = arith.constant 0 : index
    %11 = vector.load %arg2[%c0_11, %c1_12, %c0_13, %c0_14] : memref<3x3x16x24xbf16, #tpu.memory_space<vmem>>, vector<1x1x16x24xbf16>
    %12 = vector.shape_cast %11 : vector<1x1x16x24xbf16> to vector<16x24xbf16>
    %cst_15 = arith.constant dense<0.000000e+00> : vector<64x24xf32>
    %13 = tpu.matmul %10, %12, %cst_15 {dimension_numbers = #tpu.dot_dimension_numbers<[1], [0], [0], [1], [0, 0, 1, 1], [], []>} : vector<64x16xbf16>, vector<16x24xbf16>, vector<64x24xf32> -> vector<64x24xf32>
    %14 = arith.addf %7, %13 : vector<64x24xf32>
    %c0_16 = arith.constant 0 : index
    %c0_17 = arith.constant 0 : index
    %c2 = arith.constant 2 : index
    %c0_18 = arith.constant 0 : index
    %15 = vector.load %arg1[%c0_16, %c0_17, %c2, %c0_18] : memref<1x10x10x16xbf16, #tpu.memory_space<vmem>>, vector<1x8x8x16xbf16>
    %16 = vector.shape_cast %15 : vector<1x8x8x16xbf16> to vector<8x8x16xbf16>
    %17 = vector.shape_cast %16 : vector<8x8x16xbf16> to vector<64x16xbf16>
    %c0_19 = arith.constant 0 : index
    %c2_20 = arith.constant 2 : index
    %c0_21 = arith.constant 0 : index
    %c0_22 = arith.constant 0 : index
    %18 = vector.load %arg2[%c0_19, %c2_20, %c0_21, %c0_22] : memref<3x3x16x24xbf16, #tpu.memory_space<vmem>>, vector<1x1x16x24xbf16>
    %19 = vector.shape_cast %18 : vector<1x1x16x24xbf16> to vector<16x24xbf16>
    %cst_23 = arith.constant dense<0.000000e+00> : vector<64x24xf32>
    %20 = tpu.matmul %17, %19, %cst_23 {dimension_numbers = #tpu.dot_dimension_numbers<[1], [0], [0], [1], [0, 0, 1, 1], [], []>} : vector<64x16xbf16>, vector<16x24xbf16>, vector<64x24xf32> -> vector<64x24xf32>
    %21 = arith.addf %14, %20 : vector<64x24xf32>
    %c0_24 = arith.constant 0 : index
    %c1_25 = arith.constant 1 : index
    %c0_26 = arith.constant 0 : index
    %c0_27 = arith.constant 0 : index
    %22 = vector.load %arg1[%c0_24, %c1_25, %c0_26, %c0_27] : memref<1x10x10x16xbf16, #tpu.memory_space<vmem>>, vector<1x8x8x16xbf16>
    %23 = vector.shape_cast %22 : vector<1x8x8x16xbf16> to vector<8x8x16xbf16>
    %24 = vector.shape_cast %23 : vector<8x8x16xbf16> to vector<64x16xbf16>
    %c1_28 = arith.constant 1 : index
    %c0_29 = arith.constant 0 : index
    %c0_30 = arith.constant 0 : index
    %c0_31 = arith.constant 0 : index
    %25 = vector.load %arg2[%c1_28, %c0_29, %c0_30, %c0_31] : memref<3x3x16x24xbf16, #tpu.memory_space<vmem>>, vector<1x1x16x24xbf16>
    %26 = vector.shape_cast %25 : vector<1x1x16x24xbf16> to vector<16x24xbf16>
    %cst_32 = arith.constant dense<0.000000e+00> : vector<64x24xf32>
    %27 = tpu.matmul %24, %26, %cst_32 {dimension_numbers = #tpu.dot_dimension_numbers<[1], [0], [0], [1], [0, 0, 1, 1], [], []>} : vector<64x16xbf16>, vector<16x24xbf16>, vector<64x24xf32> -> vector<64x24xf32>
    %28 = arith.addf %21, %27 : vector<64x24xf32>
    %c0_33 = arith.constant 0 : index
    %c1_34 = arith.constant 1 : index
    %c1_35 = arith.constant 1 : index
    %c0_36 = arith.constant 0 : index
    %29 = vector.load %arg1[%c0_33, %c1_34, %c1_35, %c0_36] : memref<1x10x10x16xbf16, #tpu.memory_space<vmem>>, vector<1x8x8x16xbf16>
    %30 = vector.shape_cast %29 : vector<1x8x8x16xbf16> to vector<8x8x16xbf16>
    %31 = vector.shape_cast %30 : vector<8x8x16xbf16> to vector<64x16xbf16>
    %c1_37 = arith.constant 1 : index
    %c1_38 = arith.constant 1 : index
    %c0_39 = arith.constant 0 : index
    %c0_40 = arith.constant 0 : index
    %32 = vector.load %arg2[%c1_37, %c1_38, %c0_39, %c0_40] : memref<3x3x16x24xbf16, #tpu.memory_space<vmem>>, vector<1x1x16x24xbf16>
    %33 = vector.shape_cast %32 : vector<1x1x16x24xbf16> to vector<16x24xbf16>
    %cst_41 = arith.constant dense<0.000000e+00> : vector<64x24xf32>
    %34 = tpu.matmul %31, %33, %cst_41 {dimension_numbers = #tpu.dot_dimension_numbers<[1], [0], [0], [1], [0, 0, 1, 1], [], []>} : vector<64x16xbf16>, vector<16x24xbf16>, vector<64x24xf32> -> vector<64x24xf32>
    %35 = arith.addf %28, %34 : vector<64x24xf32>
    %c0_42 = arith.constant 0 : index
    %c1_43 = arith.constant 1 : index
    %c2_44 = arith.constant 2 : index
    %c0_45 = arith.constant 0 : index
    %36 = vector.load %arg1[%c0_42, %c1_43, %c2_44, %c0_45] : memref<1x10x10x16xbf16, #tpu.memory_space<vmem>>, vector<1x8x8x16xbf16>
    %37 = vector.shape_cast %36 : vector<1x8x8x16xbf16> to vector<8x8x16xbf16>
    %38 = vector.shape_cast %37 : vector<8x8x16xbf16> to vector<64x16xbf16>
    %c1_46 = arith.constant 1 : index
    %c2_47 = arith.constant 2 : index
    %c0_48 = arith.constant 0 : index
    %c0_49 = arith.constant 0 : index
    %39 = vector.load %arg2[%c1_46, %c2_47, %c0_48, %c0_49] : memref<3x3x16x24xbf16, #tpu.memory_space<vmem>>, vector<1x1x16x24xbf16>
    %40 = vector.shape_cast %39 : vector<1x1x16x24xbf16> to vector<16x24xbf16>
    %cst_50 = arith.constant dense<0.000000e+00> : vector<64x24xf32>
    %41 = tpu.matmul %38, %40, %cst_50 {dimension_numbers = #tpu.dot_dimension_numbers<[1], [0], [0], [1], [0, 0, 1, 1], [], []>} : vector<64x16xbf16>, vector<16x24xbf16>, vector<64x24xf32> -> vector<64x24xf32>
    %42 = arith.addf %35, %41 : vector<64x24xf32>
    %c0_51 = arith.constant 0 : index
    %c2_52 = arith.constant 2 : index
    %c0_53 = arith.constant 0 : index
    %c0_54 = arith.constant 0 : index
    %43 = vector.load %arg1[%c0_51, %c2_52, %c0_53, %c0_54] : memref<1x10x10x16xbf16, #tpu.memory_space<vmem>>, vector<1x8x8x16xbf16>
    %44 = vector.shape_cast %43 : vector<1x8x8x16xbf16> to vector<8x8x16xbf16>
    %45 = vector.shape_cast %44 : vector<8x8x16xbf16> to vector<64x16xbf16>
    %c2_55 = arith.constant 2 : index
    %c0_56 = arith.constant 0 : index
    %c0_57 = arith.constant 0 : index
    %c0_58 = arith.constant 0 : index
    %46 = vector.load %arg2[%c2_55, %c0_56, %c0_57, %c0_58] : memref<3x3x16x24xbf16, #tpu.memory_space<vmem>>, vector<1x1x16x24xbf16>
    %47 = vector.shape_cast %46 : vector<1x1x16x24xbf16> to vector<16x24xbf16>
    %cst_59 = arith.constant dense<0.000000e+00> : vector<64x24xf32>
    %48 = tpu.matmul %45, %47, %cst_59 {dimension_numbers = #tpu.dot_dimension_numbers<[1], [0], [0], [1], [0, 0, 1, 1], [], []>} : vector<64x16xbf16>, vector<16x24xbf16>, vector<64x24xf32> -> vector<64x24xf32>
    %49 = arith.addf %42, %48 : vector<64x24xf32>
    %c0_60 = arith.constant 0 : index
    %c2_61 = arith.constant 2 : index
    %c1_62 = arith.constant 1 : index
    %c0_63 = arith.constant 0 : index
    %50 = vector.load %arg1[%c0_60, %c2_61, %c1_62, %c0_63] : memref<1x10x10x16xbf16, #tpu.memory_space<vmem>>, vector<1x8x8x16xbf16>
    %51 = vector.shape_cast %50 : vector<1x8x8x16xbf16> to vector<8x8x16xbf16>
    %52 = vector.shape_cast %51 : vector<8x8x16xbf16> to vector<64x16xbf16>
    %c2_64 = arith.constant 2 : index
    %c1_65 = arith.constant 1 : index
    %c0_66 = arith.constant 0 : index
    %c0_67 = arith.constant 0 : index
    %53 = vector.load %arg2[%c2_64, %c1_65, %c0_66, %c0_67] : memref<3x3x16x24xbf16, #tpu.memory_space<vmem>>, vector<1x1x16x24xbf16>
    %54 = vector.shape_cast %53 : vector<1x1x16x24xbf16> to vector<16x24xbf16>
    %cst_68 = arith.constant dense<0.000000e+00> : vector<64x24xf32>
    %55 = tpu.matmul %52, %54, %cst_68 {dimension_numbers = #tpu.dot_dimension_numbers<[1], [0], [0], [1], [0, 0, 1, 1], [], []>} : vector<64x16xbf16>, vector<16x24xbf16>, vector<64x24xf32> -> vector<64x24xf32>
    %56 = arith.addf %49, %55 : vector<64x24xf32>
    %c0_69 = arith.constant 0 : index
    %c2_70 = arith.constant 2 : index
    %c2_71 = arith.constant 2 : index
    %c0_72 = arith.constant 0 : index
    %57 = vector.load %arg1[%c0_69, %c2_70, %c2_71, %c0_72] : memref<1x10x10x16xbf16, #tpu.memory_space<vmem>>, vector<1x8x8x16xbf16>
    %58 = vector.shape_cast %57 : vector<1x8x8x16xbf16> to vector<8x8x16xbf16>
    %59 = vector.shape_cast %58 : vector<8x8x16xbf16> to vector<64x16xbf16>
    %c2_73 = arith.constant 2 : index
    %c2_74 = arith.constant 2 : index
    %c0_75 = arith.constant 0 : index
    %c0_76 = arith.constant 0 : index
    %60 = vector.load %arg2[%c2_73, %c2_74, %c0_75, %c0_76] : memref<3x3x16x24xbf16, #tpu.memory_space<vmem>>, vector<1x1x16x24xbf16>
    %61 = vector.shape_cast %60 : vector<1x1x16x24xbf16> to vector<16x24xbf16>
    %cst_77 = arith.constant dense<0.000000e+00> : vector<64x24xf32>
    %62 = tpu.matmul %59, %61, %cst_77 {dimension_numbers = #tpu.dot_dimension_numbers<[1], [0], [0], [1], [0, 0, 1, 1], [], []>} : vector<64x16xbf16>, vector<16x24xbf16>, vector<64x24xf32> -> vector<64x24xf32>
    %63 = arith.addf %56, %62 : vector<64x24xf32>
    %c0_78 = arith.constant 0 : index
    %c0_79 = arith.constant 0 : index
    %64 = vector.load %arg3[%c0_78, %c0_79] : memref<1x24xf32, #tpu.memory_space<vmem>>, vector<1x24xf32>
    %65 = vector.broadcast %64 : vector<1x24xf32> to vector<64x24xf32>
    %66 = arith.addf %63, %65 : vector<64x24xf32>
    %67 = vector.shape_cast %66 : vector<64x24xf32> to vector<8x8x24xf32>
    %c0_80 = arith.constant 0 : index
    %c0_81 = arith.constant 0 : index
    %c0_82 = arith.constant 0 : index
    %c0_83 = arith.constant 0 : index
    %68 = vector.load %arg4[%c0_80, %c0_81, %c0_82, %c0_83] : memref<1x8x8x24xf32, #tpu.memory_space<vmem>>, vector<1x8x8x24xf32>
    %69 = vector.shape_cast %68 : vector<1x8x8x24xf32> to vector<8x8x24xf32>
    %70 = vector.shape_cast %67 : vector<8x8x24xf32> to vector<1x8x8x24xf32>
    tpu.vector_store %arg4[%c0_80, %c0_81, %c0_82, %c0_83], %70 {strides = array<i32>} : memref<1x8x8x24xf32, #tpu.memory_space<vmem>>, vector<1x8x8x24xf32>,
    return
  }
  func.func @transform_0(%arg0: i32) -> (i32, i32, i32, i32) {
    %c0_i32 = arith.constant 0 : i32
    %c0_i32_0 = arith.constant 0 : i32
    %c0_i32_1 = arith.constant 0 : i32
    %c0_i32_2 = arith.constant 0 : i32
    return %arg0, %c0_i32, %c0_i32_0, %c0_i32_1 : i32, i32, i32, i32
  }
  func.func @transform_1(%arg0: i32) -> (i32, i32, i32, i32) {
    %c0_i32 = arith.constant 0 : i32
    %c0_i32_0 = arith.constant 0 : i32
    %c0_i32_1 = arith.constant 0 : i32
    %c0_i32_2 = arith.constant 0 : i32
    %c0_i32_3 = arith.constant 0 : i32
    return %c0_i32, %c0_i32_0, %c0_i32_1, %c0_i32_2 : i32, i32, i32, i32
  }
  func.func @transform_2(%arg0: i32) -> (i32, i32) {
    %c0_i32 = arith.constant 0 : i32
    %c0_i32_0 = arith.constant 0 : i32
    %c0_i32_1 = arith.constant 0 : i32
    return %c0_i32, %c0_i32_0 : i32, i32
  }
  func.func @transform_3(%arg0: i32) -> (i32, i32, i32, i32) {
    %c0_i32 = arith.constant 0 : i32
    %c0_i32_0 = arith.constant 0 : i32
    %c0_i32_1 = arith.constant 0 : i32
    %c0_i32_2 = arith.constant 0 : i32
    return %arg0, %c0_i32, %c0_i32_0, %c0_i32_1 : i32, i32, i32, i32
  }
}

</mosaic_0001>

<llo_original>
// kernel: tpu_custom_call.1
$region0: #{tpu_custom_call.1}
  #allocation0 [shape = 'u32[]', space=smem, size = 0x4, offset = 0x4, fixed_abs, tag = 'smem constant byte address 0x4 - core index']
  #allocation1 [shape = 'u32[72,128]{1,0:T(1,128)}', space=vmem, size = 0x9000, scoped, tag = 'internal scratch']
  %s0 = inlined_call_operand.vmem [shape: bf16[3,10,10,16], index: 0, kind: input, shape index: {}]
  %s1 = inlined_call_operand.vmem [shape: bf16[3,3,16,24], index: 1, kind: input, shape index: {}]
  %s2 = inlined_call_operand.vmem [shape: f32[1,24], index: 2, kind: input, shape index: {}]
  %s3 = inlined_call_operand.hbm [shape: f32[3,8,8,24], index: 3, kind: output, shape index: {}]
  %s4 = sld [smem:[#allocation0]]
  $region45: #{tpu_custom_call.1} parent=0
    _
  %s6 = ssub.s32 1, %s4
  %s7 = scalar_select 0, %s6, %s4
  $region1: #{tpu_custom_call.1} parent=0
    #allocation2 [shape = 'u8[65536]{0}', space=vmem, size = 0x10000, scoped, tag = 'output window, operand 0']
    #allocation3 [shape = 's32[2]{0}', space=sflag, size = 0x8, scoped, tag = 'scoped memory for tpu_custom_call.1']
    %8 = vsyncpa [#allocation3], 0
    %s9 = scalar_lea.sflag [#allocation3], 1
    %10 = vsyncpa %s9, 0
    loop: start=0, step=1, limit=5
    $region2: #{tpu_custom_call.1} parent=1 // loop_pre_header
      _
    $region3: #{tpu_custom_call.1} parent=1 // loop_header
      %s12 = sphi 0, %s16
      %p13 = scmp.ge.s32.totalorder %s12, 5
      %s22 = sphi 0, %s24
      %s25 = sphi 0, %s22
      %s26 = sphi 0, %s25
      %s42 = sphi 0, %s26
      %s46 = sphi 0, %s46
      %s48 = sphi 0, %s46
      %s49 = sphi 0, %s48
      %s63 = sphi 0, %s49
      %s67 = sphi 0, %s67
      %s69 = sphi 0, %s67
      %s70 = sphi 0, %s69
      %s84 = sphi 0, %s70
      %s90 = sphi 0, %s92
      %s93 = sphi 0, %s90
      %s94 = sphi 0, %s93
      %s110 = sphi 0, %s94
    $region4: #{tpu_custom_call.1} parent=1 // loop_header_branch
      %15 = sbr.rel (%p13) target = $region8
    $region5: #{tpu_custom_call.1} parent=1 // loop_body
      %s17 = ssub.s32 %s12, 1
      %s18 = ssub.s32 %s12, 2
      %s19 = sadd.s32 %s12, 1
      %s20 = ssub.s32 %s12, %s19
      %p21 = scmp.eq.s32.totalorder %s20, 0
      %s23 = sadd.s32 %s22, 1
      %s24 = scalar_select %p21, %s22, %s23
      %p27 = pneg %p21
      %p28 = scmp.eq.s32.totalorder %s12, 2
      %p29 = por %p27, %p28
      %p30 = scmp.ne.s32.totalorder %s22, %s25
      %p31 = scmp.eq.s32.totalorder %s12, 0
      %p32 = por %p30, %p31
      %p33 = scmp.ne.s32.totalorder %s22, %s25
      %p34 = scmp.eq.s32.totalorder %s17, 2
      %p35 = por %p33, %p34
      %p36 = scmp.ne.s32.totalorder %s25, %s26
      %p37 = scmp.eq.s32.totalorder %s17, 0
      %p38 = por %p36, %p37
      %p39 = scmp.ne.s32.totalorder %s25, %s26
      %p40 = scmp.eq.s32.totalorder %s18, 2
      %p41 = por %p39, %p40
      %p43 = scmp.ne.s32.totalorder %s26, %s42
      %p44 = scmp.eq.s32.totalorder %s18, 0
      %p45 = por %p43, %p44
      %s47 = sadd.s32 %s46, 1
      %p50 = scmp.eq.s32.totalorder %s12, 2
      %p51 = scmp.ne.s32.totalorder %s46, %s48
      %p52 = scmp.eq.s32.totalorder %s12, 0
      %p53 = por %p51, %p52
      %p54 = scmp.ne.s32.totalorder %s46, %s48
      %p55 = scmp.eq.s32.totalorder %s17, 2
      %p56 = por %p54, %p55
      %p57 = scmp.ne.s32.totalorder %s48, %s49
      %p58 = scmp.eq.s32.totalorder %s17, 0
      %p59 = por %p57, %p58
      %p60 = scmp.ne.s32.totalorder %s48, %s49
      %p61 = scmp.eq.s32.totalorder %s18, 2
      %p62 = por %p60, %p61
      %p64 = scmp.ne.s32.totalorder %s49, %s63
      %p65 = scmp.eq.s32.totalorder %s18, 0
      %p66 = por %p64, %p65
      %s68 = sadd.s32 %s67, 1
      %p71 = scmp.eq.s32.totalorder %s12, 2
      %p72 = scmp.ne.s32.totalorder %s67, %s69
      %p73 = scmp.eq.s32.totalorder %s12, 0
      %p74 = por %p72, %p73
      %p75 = scmp.ne.s32.totalorder %s67, %s69
      %p76 = scmp.eq.s32.totalorder %s17, 2
      %p77 = por %p75, %p76
      %p78 = scmp.ne.s32.totalorder %s69, %s70
      %p79 = scmp.eq.s32.totalorder %s17, 0
      %p80 = por %p78, %p79
      %p81 = scmp.ne.s32.totalorder %s69, %s70
      %p82 = scmp.eq.s32.totalorder %s18, 2
      %p83 = por %p81, %p82
      %p85 = scmp.ne.s32.totalorder %s70, %s84
      %p86 = scmp.eq.s32.totalorder %s18, 0
      %p87 = por %p85, %p86
      %s88 = ssub.s32 %s12, %s19
      %p89 = scmp.eq.s32.totalorder %s88, 0
      %s91 = sadd.s32 %s90, 1
      %s92 = scalar_select %p89, %s90, %s91
      %p95 = pneg %p89
      %p96 = scmp.eq.s32.totalorder %s12, 2
      %p97 = por %p95, %p96
      %p98 = scmp.ne.s32.totalorder %s90, %s93
      %p99 = scmp.eq.s32.totalorder %s12, 0
      %p100 = por %p98, %p99
      %p101 = scmp.ne.s32.totalorder %s90, %s93
      %p102 = scmp.eq.s32.totalorder %s17, 2
      %p103 = por %p101, %p102
      %p104 = scmp.ne.s32.totalorder %s93, %s94
      %p105 = scmp.eq.s32.totalorder %s17, 0
      %p106 = por %p104, %p105
      %p107 = scmp.ne.s32.totalorder %s93, %s94
      %p108 = scmp.eq.s32.totalorder %s18, 2
      %p109 = por %p107, %p108
      %p111 = scmp.ne.s32.totalorder %s94, %s110
      %p112 = scmp.eq.s32.totalorder %s18, 0
      %p113 = por %p111, %p112
      %p114 = scmp.le.s32.totalorder 1, %s12
      %p115 = scmp.lt.s32.totalorder %s12, 4
      %p116 = pnand %p114, %p115
      %p117 = pneg %p116
      // Predicated region
      $region9: #{tpu_custom_call.1} parent=5 // pred_check
        _
      $region10: #{tpu_custom_call.1} parent=5 // pred_check_branch
        %119 = sbr.rel (%p116) target = $region12
      $region11: #{tpu_custom_call.1} parent=5 // pred_region
        %s120 = ssub.s32 %s12, 1
        // Predicated region
        $region13: #{tpu_custom_call.1} parent=11 // pred_check
          %p121 = pneg %p59
        $region14: #{tpu_custom_call.1} parent=11 // pred_check_branch
          %123 = sbr.rel (%p121) target = $region16
        $region15: #{tpu_custom_call.1} parent=11 // pred_region
          _
        $region16: #{tpu_custom_call.1} parent=11 // pred_fallthru
          _
        // Predicated region
        $region17: #{tpu_custom_call.1} parent=11 // pred_check
          %p124 = pneg %p80
        $region18: #{tpu_custom_call.1} parent=11 // pred_check_branch
          %126 = sbr.rel (%p124) target = $region20
        $region19: #{tpu_custom_call.1} parent=11 // pred_region
          _
        $region20: #{tpu_custom_call.1} parent=11 // pred_fallthru
          _
      $region12: #{tpu_custom_call.1} parent=5 // pred_fallthru
        _
      %p127 = scmp.lt.s32.totalorder %s12, 3
      // Predicated region
      $region21: #{tpu_custom_call.1} parent=5 // pred_check
        %p128 = pneg %p127
      $region22: #{tpu_custom_call.1} parent=5 // pred_check_branch
        %130 = sbr.rel (%p128) target = $region24
      $region23: #{tpu_custom_call.1} parent=5 // pred_region
        // Predicated region
        $region25: #{tpu_custom_call.1} parent=23 // pred_check
          %p131 = pneg %p32
        $region26: #{tpu_custom_call.1} parent=23 // pred_check_branch
          %133 = sbr.rel (%p131) target = $region28
        $region27: #{tpu_custom_call.1} parent=23 // pred_region
          %p134 = scmp.lt.s32.totalorder %s12, 2
          %s135 = scalar_select %p134, %s12, 2
          %s136 = smul.addr %s135, 20
          %s137 = smul.addr %s136, 4
          %s138 = scalar_lea.vmem %s0, %s137
        $region28: #{tpu_custom_call.1} parent=23 // pred_fallthru
          _
      $region24: #{tpu_custom_call.1} parent=5 // pred_fallthru
        _
      %p139 = scmp.le.s32.totalorder 1, %s12
      %p140 = scmp.lt.s32.totalorder %s12, 4
      %p141 = pnand %p139, %p140
      %p142 = pneg %p141
      // Predicated region
      $region29: #{tpu_custom_call.1} parent=5 // pred_check
        _
      $region30: #{tpu_custom_call.1} parent=5 // pred_check_branch
        %144 = sbr.rel (%p141) target = $region32
      $region31: #{tpu_custom_call.1} parent=5 // pred_region
        %s145 = ssub.s32 %s12, 1
        %p146 = scmp.lt.s32.totalorder %s17, 2
        %s147 = scalar_select %p146, %s17, 2
        %s148 = smul.addr %s147, 20
        %s149 = smul.addr %s148, 4
        %s150 = scalar_lea.vmem %s0, %s149
        %p151 = pneg %p38
        %p152 = pneg %p35
        %p153 = pneg %p59
        %p154 = pneg %p56
        %p155 = pneg %p80
        %p156 = pneg %p77
        %p157 = pneg %p106
        %p158 = pneg %p103
        %s159 = sand.u32 %s93, 1
        %s160 = scalar_lea.sflag [#allocation3], %s159
        %s161 = sand.u32 %s93, 1
        %s162 = smul.addr %s161, 64
        %s163 = scalar_lea.vmem [#allocation2], %s162
        %p164 = scmp.lt.s32.totalorder %s17, 2
        %s165 = scalar_select %p164, %s17, 2
        %s166 = smul.addr %s165, 20
        %s167 = smul.addr %s166, 4
        %s168 = scalar_lea.vmem %s0, %s167
        %v170 = vld [vmem:[%s168] sm:$0xf]
        %v171 = vld [vmem:[%s168 + $0x8] sm:$0xf]
        %v172 = vld [vmem:[%s168 + $0x10] sm:$0xf]
        %v173 = vld [vmem:[%s168 + $0x18] sm:$0xf]
        %v174 = vld [vmem:[%s168 + $0x20] sm:$0xf]
        %v175 = vld [vmem:[%s168 + $0x28] sm:$0xf]
        %v176 = vld [vmem:[%s168 + $0x30] sm:$0xf]
        %v177 = vld [vmem:[%s168 + $0x38] sm:$0xf]
        %v178 = vld [vmem:[%s1] sm:$0xf]
        %v179 = vld [vmem:[%s1 + $0x4] sm:$0xf]
        %v180 = vld [vmem:[%s168 + $0x4] sm:$0x1]
        %v181 = vld [vmem:[%s168 + $0xc] sm:$0x1]
        %v182 = vld [vmem:[%s168 + $0x14] sm:$0x1]
        %v183 = vld [vmem:[%s168 + $0x1c] sm:$0x1]
        %v184 = vld [vmem:[%s168 + $0x24] sm:$0x1]
        %v185 = vld [vmem:[%s168 + $0x2c] sm:$0x1]
        %v186 = vld [vmem:[%s168 + $0x34] sm:$0x1]
        %v187 = vld [vmem:[%s168 + $0x3c] sm:$0x1]
        %vm188 = vsmask.f32 3328
        %vm189 = vsmask.f32 7440
        %vm190 = vmor %vm188, %vm189
        %v192 = vshrl.u32 %v170, 16
        %v194 = vrot.slane %v192, 4
        %v195 = vshll.u32 %v170, 16
        %v197 = vrot.slane %v195, 5
        %v198 = vor.u32 %v194, %v197
        %v199 = vrot.slane %v198, 4
        %v201 = vshll.u32 %v180, 16
        %v203 = vrot.slane %v201, 5
        %v204 = vsel %vm190, %v199, %v203
        %v206 = vshrl.u32 %v171, 16
        %v208 = vrot.slane %v206, 4
        %v209 = vshll.u32 %v171, 16
        %v211 = vrot.slane %v209, 5
        %v212 = vor.u32 %v208, %v211
        %v213 = vrot.slane %v212, 4
        %v215 = vshll.u32 %v181, 16
        %v217 = vrot.slane %v215, 5
        %v218 = vsel %vm190, %v213, %v217
        %v220 = vshrl.u32 %v172, 16
        %v222 = vrot.slane %v220, 4
        %v223 = vshll.u32 %v172, 16
        %v225 = vrot.slane %v223, 5
        %v226 = vor.u32 %v222, %v225
        %v227 = vrot.slane %v226, 4
        %v229 = vshll.u32 %v182, 16
        %v231 = vrot.slane %v229, 5
        %v232 = vsel %vm190, %v227, %v231
        %v234 = vshrl.u32 %v173, 16
        %v236 = vrot.slane %v234, 4
        %v237 = vshll.u32 %v173, 16
        %v239 = vrot.slane %v237, 5
        %v240 = vor.u32 %v236, %v239
        %v241 = vrot.slane %v240, 4
        %v243 = vshll.u32 %v183, 16
        %v245 = vrot.slane %v243, 5
        %v246 = vsel %vm190, %v241, %v245
        %v248 = vshrl.u32 %v174, 16
        %v250 = vrot.slane %v248, 4
        %v251 = vshll.u32 %v174, 16
        %v253 = vrot.slane %v251, 5
        %v254 = vor.u32 %v250, %v253
        %v255 = vrot.slane %v254, 4
        %v257 = vshll.u32 %v184, 16
        %v259 = vrot.slane %v257, 5
        %v260 = vsel %vm190, %v255, %v259
        %v262 = vshrl.u32 %v175, 16
        %v264 = vrot.slane %v262, 4
        %v265 = vshll.u32 %v175, 16
        %v267 = vrot.slane %v265, 5
        %v268 = vor.u32 %v264, %v267
        %v269 = vrot.slane %v268, 4
        %v271 = vshll.u32 %v185, 16
        %v273 = vrot.slane %v271, 5
        %v274 = vsel %vm190, %v269, %v273
        %v276 = vshrl.u32 %v176, 16
        %v278 = vrot.slane %v276, 4
        %v279 = vshll.u32 %v176, 16
        %v281 = vrot.slane %v279, 5
        %v282 = vor.u32 %v278, %v281
        %v283 = vrot.slane %v282, 4
        %v285 = vshll.u32 %v186, 16
        %v287 = vrot.slane %v285, 5
        %v288 = vsel %vm190, %v283, %v287
        %v290 = vshrl.u32 %v177, 16
        %v292 = vrot.slane %v290, 4
        %v293 = vshll.u32 %v177, 16
        %v295 = vrot.slane %v293, 5
        %v296 = vor.u32 %v292, %v295
        %v297 = vrot.slane %v296, 4
        %v299 = vshll.u32 %v187, 16
        %v301 = vrot.slane %v299, 5
        %v302 = vsel %vm190, %v297, %v301
        %s303 = scalar_lea.vmem %s1, 8
        %v304 = vld [vmem:[%s303] sm:$0xf]
        %v305 = vld [vmem:[%s303 + $0x4] sm:$0xf]
        %v306 = vunpack.c.l.b16 %v204
        %v307 = vunpack.c.l.b16 %v218
        %v308 = vunpack.c.l.b16 %v232
        %v309 = vunpack.c.l.b16 %v246
        %v310 = vunpack.c.l.b16 %v260
        %v311 = vunpack.c.l.b16 %v274
        %v312 = vunpack.c.l.b16 %v288
        %v313 = vunpack.c.l.b16 %v302
        %v314 = vpack.c.b16 %v307, %v306
        %v315 = vpack.c.b16 %v309, %v308
        %v316 = vpack.c.b16 %v311, %v310
        %v317 = vpack.c.b16 %v313, %v312
        %v320 = vunpack.c.l.b16 %v304
        %v321 = vunpack.c.l.b16 %v305
        %v322 = vpack.c.b16 %v321, %v320
        %vm324 = vcmask 130048
        %v326 = vsel %vm324, %v314, 0
        %v329 = vsel %vm324, %v315, 0
        %v332 = vsel %vm324, %v316, 0
        %v335 = vsel %vm324, %v317, 0
        %337 = vmatpush.bf16.msra.mxu0 0
        %338 = vmatpush.bf16.msra.mxu0 0
        %339 = vmatpush.bf16.msra.mxu0 0
        %340 = vmatpush.bf16.msra.mxu0 0
        %341 = vmatpush.bf16.msra.mxu0 0
        %342 = vmatpush.bf16.msra.mxu0 0
        %343 = vmatpush.bf16.msra.mxu0 0
        %344 = vmatpush.bf16.msra.mxu0 %v322
        %345 = vmatmul.bf16.gmra.mxu0 %v326
        %v346 = vpop.f32.mrf.mxu0
        %v347 = vadd.f32 0.0, %v346
        %v348 = vpop.f32.mrf.mxu0
        %v349 = vadd.f32 0.0, %v348
        %350 = vmatmul.bf16.gmra.mxu0 %v329
        %v351 = vpop.f32.mrf.mxu0
        %v352 = vadd.f32 0.0, %v351
        %v353 = vpop.f32.mrf.mxu0
        %v354 = vadd.f32 0.0, %v353
        %355 = vmatmul.bf16.gmra.mxu0 %v332
        %v356 = vpop.f32.mrf.mxu0
        %v357 = vadd.f32 0.0, %v356
        %v358 = vpop.f32.mrf.mxu0
        %v359 = vadd.f32 0.0, %v358
        %360 = vmatmul.bf16.gmra.mxu0 %v335
        %v361 = vpop.f32.mrf.mxu0
        %v362 = vadd.f32 0.0, %v361
        %v363 = vpop.f32.mrf.mxu0
        %v364 = vadd.f32 0.0, %v363
        %365 = vdwg.mxu0
        %v374 = vunpack.c.l.b16 %v170
        %v375 = vunpack.c.l.b16 %v171
        %v376 = vunpack.c.l.b16 %v172
        %v377 = vunpack.c.l.b16 %v173
        %v378 = vunpack.c.l.b16 %v174
        %v379 = vunpack.c.l.b16 %v175
        %v380 = vunpack.c.l.b16 %v176
        %v381 = vunpack.c.l.b16 %v177
        %v382 = vpack.c.b16 %v375, %v374
        %v383 = vpack.c.b16 %v377, %v376
        %v384 = vpack.c.b16 %v379, %v378
        %v385 = vpack.c.b16 %v381, %v380
        %v388 = vunpack.c.l.b16 %v178
        %v389 = vunpack.c.l.b16 %v179
        %v390 = vpack.c.b16 %v389, %v388
        %v393 = vsel %vm324, %v382, 0
        %v396 = vsel %vm324, %v383, 0
        %v399 = vsel %vm324, %v384, 0
        %v402 = vsel %vm324, %v385, 0
        %404 = vmatpush.bf16.msra.mxu0 0
        %405 = vmatpush.bf16.msra.mxu0 0
        %406 = vmatpush.bf16.msra.mxu0 0
        %407 = vmatpush.bf16.msra.mxu0 0
        %408 = vmatpush.bf16.msra.mxu0 0
        %409 = vmatpush.bf16.msra.mxu0 0
        %410 = vmatpush.bf16.msra.mxu0 0
        %411 = vmatpush.bf16.msra.mxu0 %v390
        %412 = vmatmul.bf16.gmra.mxu0 %v393
        %v413 = vpop.f32.mrf.mxu0
        %v414 = vadd.f32 %v347, %v413
        %v415 = vpop.f32.mrf.mxu0
        %v416 = vadd.f32 %v349, %v415
        %417 = vmatmul.bf16.gmra.mxu0 %v396
        %v418 = vpop.f32.mrf.mxu0
        %v419 = vadd.f32 %v352, %v418
        %v420 = vpop.f32.mrf.mxu0
        %v421 = vadd.f32 %v354, %v420
        %422 = vmatmul.bf16.gmra.mxu0 %v399
        %v423 = vpop.f32.mrf.mxu0
        %v424 = vadd.f32 %v357, %v423
        %v425 = vpop.f32.mrf.mxu0
        %v426 = vadd.f32 %v359, %v425
        %427 = vmatmul.bf16.gmra.mxu0 %v402
        %v428 = vpop.f32.mrf.mxu0
        %v429 = vadd.f32 %v362, %v428
        %v430 = vpop.f32.mrf.mxu0
        %v431 = vadd.f32 %v364, %v430
        %432 = vdwg.mxu0
        %v433 = vld [vmem:[%s168] sm:$0xe]
        %v434 = vld [vmem:[%s168 + $0x8] sm:$0xe]
        %v435 = vld [vmem:[%s168 + $0x10] sm:$0xe]
        %v436 = vld [vmem:[%s168 + $0x18] sm:$0xe]
        %v437 = vld [vmem:[%s168 + $0x20] sm:$0xe]
        %v438 = vld [vmem:[%s168 + $0x28] sm:$0xe]
        %v439 = vld [vmem:[%s168 + $0x30] sm:$0xe]
        %v440 = vld [vmem:[%s168 + $0x38] sm:$0xe]
        %vm457 = vcmask 1042432
        %vm458 = vcmask 1046532
        %vm459 = vmor %vm457, %vm458
        %v460 = vrot.slane %v433, 5
        %v461 = vrot.slane %v460, 4
        %v462 = vrot.slane %v180, 5
        %v463 = vsel %vm459, %v461, %v462
        %v464 = vrot.slane %v434, 5
        %v465 = vrot.slane %v464, 4
        %v466 = vrot.slane %v181, 5
        %v467 = vsel %vm459, %v465, %v466
        %v468 = vrot.slane %v435, 5
        %v469 = vrot.slane %v468, 4
        %v470 = vrot.slane %v182, 5
        %v471 = vsel %vm459, %v469, %v470
        %v472 = vrot.slane %v436, 5
        %v473 = vrot.slane %v472, 4
        %v474 = vrot.slane %v183, 5
        %v475 = vsel %vm459, %v473, %v474
        %v476 = vrot.slane %v437, 5
        %v477 = vrot.slane %v476, 4
        %v478 = vrot.slane %v184, 5
        %v479 = vsel %vm459, %v477, %v478
        %v480 = vrot.slane %v438, 5
        %v481 = vrot.slane %v480, 4
        %v482 = vrot.slane %v185, 5
        %v483 = vsel %vm459, %v481, %v482
        %v484 = vrot.slane %v439, 5
        %v485 = vrot.slane %v484, 4
        %v486 = vrot.slane %v186, 5
        %v487 = vsel %vm459, %v485, %v486
        %v488 = vrot.slane %v440, 5
        %v489 = vrot.slane %v488, 4
        %v490 = vrot.slane %v187, 5
        %v491 = vsel %vm459, %v489, %v490
        %s492 = scalar_lea.vmem %s1, 16
        %v493 = vld [vmem:[%s492] sm:$0xf]
        %v494 = vld [vmem:[%s492 + $0x4] sm:$0xf]
        %v495 = vunpack.c.l.b16 %v463
        %v496 = vunpack.c.l.b16 %v467
        %v497 = vunpack.c.l.b16 %v471
        %v498 = vunpack.c.l.b16 %v475
        %v499 = vunpack.c.l.b16 %v479
        %v500 = vunpack.c.l.b16 %v483
        %v501 = vunpack.c.l.b16 %v487
        %v502 = vunpack.c.l.b16 %v491
        %v503 = vpack.c.b16 %v496, %v495
        %v504 = vpack.c.b16 %v498, %v497
        %v505 = vpack.c.b16 %v500, %v499
        %v506 = vpack.c.b16 %v502, %v501
        %v509 = vunpack.c.l.b16 %v493
        %v510 = vunpack.c.l.b16 %v494
        %v511 = vpack.c.b16 %v510, %v509
        %v514 = vsel %vm324, %v503, 0
        %v517 = vsel %vm324, %v504, 0
        %v520 = vsel %vm324, %v505, 0
        %v523 = vsel %vm324, %v506, 0
        %525 = vmatpush.bf16.msra.mxu0 0
        %526 = vmatpush.bf16.msra.mxu0 0
        %527 = vmatpush.bf16.msra.mxu0 0
        %528 = vmatpush.bf16.msra.mxu0 0
        %529 = vmatpush.bf16.msra.mxu0 0
        %530 = vmatpush.bf16.msra.mxu0 0
        %531 = vmatpush.bf16.msra.mxu0 0
        %532 = vmatpush.bf16.msra.mxu0 %v511
        %533 = vmatmul.bf16.gmra.mxu0 %v514
        %v534 = vpop.f32.mrf.mxu0
        %v535 = vadd.f32 0.0, %v534
        %v536 = vpop.f32.mrf.mxu0
        %v537 = vadd.f32 0.0, %v536
        %538 = vmatmul.bf16.gmra.mxu0 %v517
        %v539 = vpop.f32.mrf.mxu0
        %v540 = vadd.f32 0.0, %v539
        %v541 = vpop.f32.mrf.mxu0
        %v542 = vadd.f32 0.0, %v541
        %543 = vmatmul.bf16.gmra.mxu0 %v520
        %v544 = vpop.f32.mrf.mxu0
        %v545 = vadd.f32 0.0, %v544
        %v546 = vpop.f32.mrf.mxu0
        %v547 = vadd.f32 0.0, %v546
        %548 = vmatmul.bf16.gmra.mxu0 %v523
        %v549 = vpop.f32.mrf.mxu0
        %v550 = vadd.f32 0.0, %v549
        %v551 = vpop.f32.mrf.mxu0
        %v552 = vadd.f32 0.0, %v551
        %553 = vdwg.mxu0
        %v554 = vadd.f32 %v414, %v535
        %v555 = vadd.f32 %v416, %v537
        %v556 = vadd.f32 %v419, %v540
        %v557 = vadd.f32 %v421, %v542
        %v558 = vadd.f32 %v424, %v545
        %v559 = vadd.f32 %v426, %v547
        %v560 = vadd.f32 %v429, %v550
        %v561 = vadd.f32 %v431, %v552
        %s562 = scalar_lea.vmem %s168, 8
        %v563 = vld [vmem:[%s562] sm:$0xf]
        %v564 = vld [vmem:[%s562 + $0x8] sm:$0xf]
        %v565 = vld [vmem:[%s562 + $0x10] sm:$0xf]
        %v566 = vld [vmem:[%s562 + $0x18] sm:$0xf]
        %v567 = vld [vmem:[%s562 + $0x20] sm:$0xf]
        %v568 = vld [vmem:[%s562 + $0x28] sm:$0xf]
        %v569 = vld [vmem:[%s562 + $0x30] sm:$0xf]
        %v570 = vld [vmem:[%s562 + $0x38] sm:$0xf]
        %s571 = scalar_lea.vmem %s1, 24
        %v572 = vld [vmem:[%s571] sm:$0xf]
        %v573 = vld [vmem:[%s571 + $0x4] sm:$0xf]
        %v582 = vunpack.c.l.b16 %v563
        %v583 = vunpack.c.l.b16 %v564
        %v584 = vunpack.c.l.b16 %v565
        %v585 = vunpack.c.l.b16 %v566
        %v586 = vunpack.c.l.b16 %v567
        %v587 = vunpack.c.l.b16 %v568
        %v588 = vunpack.c.l.b16 %v569
        %v589 = vunpack.c.l.b16 %v570
        %v590 = vpack.c.b16 %v583, %v582
        %v591 = vpack.c.b16 %v585, %v584
        %v592 = vpack.c.b16 %v587, %v586
        %v593 = vpack.c.b16 %v589, %v588
        %v596 = vunpack.c.l.b16 %v572
        %v597 = vunpack.c.l.b16 %v573
        %v598 = vpack.c.b16 %v597, %v596
        %v601 = vsel %vm324, %v590, 0
        %v604 = vsel %vm324, %v591, 0
        %v607 = vsel %vm324, %v592, 0
        %v610 = vsel %vm324, %v593, 0
        %612 = vmatpush.bf16.msra.mxu0 0
        %613 = vmatpush.bf16.msra.mxu0 0
        %614 = vmatpush.bf16.msra.mxu0 0
        %615 = vmatpush.bf16.msra.mxu0 0
        %616 = vmatpush.bf16.msra.mxu0 0
        %617 = vmatpush.bf16.msra.mxu0 0
        %618 = vmatpush.bf16.msra.mxu0 0
        %619 = vmatpush.bf16.msra.mxu0 %v598
        %620 = vmatmul.bf16.gmra.mxu0 %v601
        %v621 = vpop.f32.mrf.mxu0
        %v622 = vadd.f32 0.0, %v621
        %v623 = vpop.f32.mrf.mxu0
        %v624 = vadd.f32 0.0, %v623
        %625 = vmatmul.bf16.gmra.mxu0 %v604
        %v626 = vpop.f32.mrf.mxu0
        %v627 = vadd.f32 0.0, %v626
        %v628 = vpop.f32.mrf.mxu0
        %v629 = vadd.f32 0.0, %v628
        %630 = vmatmul.bf16.gmra.mxu0 %v607
        %v631 = vpop.f32.mrf.mxu0
        %v632 = vadd.f32 0.0, %v631
        %v633 = vpop.f32.mrf.mxu0
        %v634 = vadd.f32 0.0, %v633
        %635 = vmatmul.bf16.gmra.mxu0 %v610
        %v636 = vpop.f32.mrf.mxu0
        %v637 = vadd.f32 0.0, %v636
        %v638 = vpop.f32.mrf.mxu0
        %v639 = vadd.f32 0.0, %v638
        %640 = vdwg.mxu0
        %v641 = vadd.f32 %v554, %v622
        %v642 = vadd.f32 %v555, %v624
        %v643 = vadd.f32 %v556, %v627
        %v644 = vadd.f32 %v557, %v629
        %v645 = vadd.f32 %v558, %v632
        %v646 = vadd.f32 %v559, %v634
        %v647 = vadd.f32 %v560, %v637
        %v648 = vadd.f32 %v561, %v639
        %v649 = vld [vmem:[%s562] sm:$0xf]
        %v650 = vld [vmem:[%s562 + $0x4] sm:$0x1]
        %v651 = vld [vmem:[%s562 + $0x8] sm:$0xf]
        %v652 = vld [vmem:[%s562 + $0xc] sm:$0x1]
        %v653 = vld [vmem:[%s562 + $0x10] sm:$0xf]
        %v654 = vld [vmem:[%s562 + $0x14] sm:$0x1]
        %v655 = vld [vmem:[%s562 + $0x18] sm:$0xf]
        %v656 = vld [vmem:[%s562 + $0x1c] sm:$0x1]
        %v657 = vld [vmem:[%s562 + $0x20] sm:$0xf]
        %v658 = vld [vmem:[%s562 + $0x24] sm:$0x1]
        %v659 = vld [vmem:[%s562 + $0x28] sm:$0xf]
        %v660 = vld [vmem:[%s562 + $0x2c] sm:$0x1]
        %v661 = vld [vmem:[%s562 + $0x30] sm:$0xf]
        %v662 = vld [vmem:[%s562 + $0x34] sm:$0x1]
        %v663 = vld [vmem:[%s562 + $0x38] sm:$0xf]
        %v664 = vld [vmem:[%s562 + $0x3c] sm:$0x1]
        %v666 = vshrl.u32 %v649, 16
        %v668 = vrot.slane %v666, 4
        %v669 = vshll.u32 %v649, 16
        %v671 = vrot.slane %v669, 5
        %v672 = vor.u32 %v668, %v671
        %v673 = vrot.slane %v672, 4
        %v675 = vshll.u32 %v650, 16
        %v677 = vrot.slane %v675, 5
        %v678 = vsel %vm190, %v673, %v677
        %v680 = vshrl.u32 %v651, 16
        %v682 = vrot.slane %v680, 4
        %v683 = vshll.u32 %v651, 16
        %v685 = vrot.slane %v683, 5
        %v686 = vor.u32 %v682, %v685
        %v687 = vrot.slane %v686, 4
        %v689 = vshll.u32 %v652, 16
        %v691 = vrot.slane %v689, 5
        %v692 = vsel %vm190, %v687, %v691
        %v694 = vshrl.u32 %v653, 16
        %v696 = vrot.slane %v694, 4
        %v697 = vshll.u32 %v653, 16
        %v699 = vrot.slane %v697, 5
        %v700 = vor.u32 %v696, %v699
        %v701 = vrot.slane %v700, 4
        %v703 = vshll.u32 %v654, 16
        %v705 = vrot.slane %v703, 5
        %v706 = vsel %vm190, %v701, %v705
        %v708 = vshrl.u32 %v655, 16
        %v710 = vrot.slane %v708, 4
        %v711 = vshll.u32 %v655, 16
        %v713 = vrot.slane %v711, 5
        %v714 = vor.u32 %v710, %v713
        %v715 = vrot.slane %v714, 4
        %v717 = vshll.u32 %v656, 16
        %v719 = vrot.slane %v717, 5
        %v720 = vsel %vm190, %v715, %v719
        %v722 = vshrl.u32 %v657, 16
        %v724 = vrot.slane %v722, 4
        %v725 = vshll.u32 %v657, 16
        %v727 = vrot.slane %v725, 5
        %v728 = vor.u32 %v724, %v727
        %v729 = vrot.slane %v728, 4
        %v731 = vshll.u32 %v658, 16
        %v733 = vrot.slane %v731, 5
        %v734 = vsel %vm190, %v729, %v733
        %v736 = vshrl.u32 %v659, 16
        %v738 = vrot.slane %v736, 4
        %v739 = vshll.u32 %v659, 16
        %v741 = vrot.slane %v739, 5
        %v742 = vor.u32 %v738, %v741
        %v743 = vrot.slane %v742, 4
        %v745 = vshll.u32 %v660, 16
        %v747 = vrot.slane %v745, 5
        %v748 = vsel %vm190, %v743, %v747
        %v750 = vshrl.u32 %v661, 16
        %v752 = vrot.slane %v750, 4
        %v753 = vshll.u32 %v661, 16
        %v755 = vrot.slane %v753, 5
        %v756 = vor.u32 %v752, %v755
        %v757 = vrot.slane %v756, 4
        %v759 = vshll.u32 %v662, 16
        %v761 = vrot.slane %v759, 5
        %v762 = vsel %vm190, %v757, %v761
        %v764 = vshrl.u32 %v663, 16
        %v766 = vrot.slane %v764, 4
        %v767 = vshll.u32 %v663, 16
        %v769 = vrot.slane %v767, 5
        %v770 = vor.u32 %v766, %v769
        %v771 = vrot.slane %v770, 4
        %v773 = vshll.u32 %v664, 16
        %v775 = vrot.slane %v773, 5
        %v776 = vsel %vm190, %v771, %v775
        %s777 = scalar_lea.vmem %s1, 32
        %v778 = vld [vmem:[%s777] sm:$0xf]
        %v779 = vld [vmem:[%s777 + $0x4] sm:$0xf]
        %v780 = vunpack.c.l.b16 %v678
        %v781 = vunpack.c.l.b16 %v692
        %v782 = vunpack.c.l.b16 %v706
        %v783 = vunpack.c.l.b16 %v720
        %v784 = vunpack.c.l.b16 %v734
        %v785 = vunpack.c.l.b16 %v748
        %v786 = vunpack.c.l.b16 %v762
        %v787 = vunpack.c.l.b16 %v776
        %v788 = vpack.c.b16 %v781, %v780
        %v789 = vpack.c.b16 %v783, %v782
        %v790 = vpack.c.b16 %v785, %v784
        %v791 = vpack.c.b16 %v787, %v786
        %v794 = vunpack.c.l.b16 %v778
        %v795 = vunpack.c.l.b16 %v779
        %v796 = vpack.c.b16 %v795, %v794
        %v799 = vsel %vm324, %v788, 0
        %v802 = vsel %vm324, %v789, 0
        %v805 = vsel %vm324, %v790, 0
        %v808 = vsel %vm324, %v791, 0
        %810 = vmatpush.bf16.msra.mxu0 0
        %811 = vmatpush.bf16.msra.mxu0 0
        %812 = vmatpush.bf16.msra.mxu0 0
        %813 = vmatpush.bf16.msra.mxu0 0
        %814 = vmatpush.bf16.msra.mxu0 0
        %815 = vmatpush.bf16.msra.mxu0 0
        %816 = vmatpush.bf16.msra.mxu0 0
        %817 = vmatpush.bf16.msra.mxu0 %v796
        %818 = vmatmul.bf16.gmra.mxu0 %v799
        %v819 = vpop.f32.mrf.mxu0
        %v820 = vadd.f32 0.0, %v819
        %v821 = vpop.f32.mrf.mxu0
        %v822 = vadd.f32 0.0, %v821
        %823 = vmatmul.bf16.gmra.mxu0 %v802
        %v824 = vpop.f32.mrf.mxu0
        %v825 = vadd.f32 0.0, %v824
        %v826 = vpop.f32.mrf.mxu0
        %v827 = vadd.f32 0.0, %v826
        %828 = vmatmul.bf16.gmra.mxu0 %v805
        %v829 = vpop.f32.mrf.mxu0
        %v830 = vadd.f32 0.0, %v829
        %v831 = vpop.f32.mrf.mxu0
        %v832 = vadd.f32 0.0, %v831
        %833 = vmatmul.bf16.gmra.mxu0 %v808
        %v834 = vpop.f32.mrf.mxu0
        %v835 = vadd.f32 0.0, %v834
        %v836 = vpop.f32.mrf.mxu0
        %v837 = vadd.f32 0.0, %v836
        %838 = vdwg.mxu0
        %v839 = vadd.f32 %v641, %v820
        %v840 = vadd.f32 %v642, %v822
        %v841 = vadd.f32 %v643, %v825
        %v842 = vadd.f32 %v644, %v827
        %v843 = vadd.f32 %v645, %v830
        %v844 = vadd.f32 %v646, %v832
        %v845 = vadd.f32 %v647, %v835
        %v846 = vadd.f32 %v648, %v837
        %v847 = vld [vmem:[%s562] sm:$0xe]
        %v848 = vld [vmem:[%s562 + $0x8] sm:$0xe]
        %v849 = vld [vmem:[%s562 + $0x10] sm:$0xe]
        %v850 = vld [vmem:[%s562 + $0x18] sm:$0xe]
        %v851 = vld [vmem:[%s562 + $0x20] sm:$0xe]
        %v852 = vld [vmem:[%s562 + $0x28] sm:$0xe]
        %v853 = vld [vmem:[%s562 + $0x30] sm:$0xe]
        %v854 = vld [vmem:[%s562 + $0x38] sm:$0xe]
        %v871 = vrot.slane %v847, 5
        %v872 = vrot.slane %v871, 4
        %v873 = vrot.slane %v650, 5
        %v874 = vsel %vm459, %v872, %v873
        %v875 = vrot.slane %v848, 5
        %v876 = vrot.slane %v875, 4
        %v877 = vrot.slane %v652, 5
        %v878 = vsel %vm459, %v876, %v877
        %v879 = vrot.slane %v849, 5
        %v880 = vrot.slane %v879, 4
        %v881 = vrot.slane %v654, 5
        %v882 = vsel %vm459, %v880, %v881
        %v883 = vrot.slane %v850, 5
        %v884 = vrot.slane %v883, 4
        %v885 = vrot.slane %v656, 5
        %v886 = vsel %vm459, %v884, %v885
        %v887 = vrot.slane %v851, 5
        %v888 = vrot.slane %v887, 4
        %v889 = vrot.slane %v658, 5
        %v890 = vsel %vm459, %v888, %v889
        %v891 = vrot.slane %v852, 5
        %v892 = vrot.slane %v891, 4
        %v893 = vrot.slane %v660, 5
        %v894 = vsel %vm459, %v892, %v893
        %v895 = vrot.slane %v853, 5
        %v896 = vrot.slane %v895, 4
        %v897 = vrot.slane %v662, 5
        %v898 = vsel %vm459, %v896, %v897
        %v899 = vrot.slane %v854, 5
        %v900 = vrot.slane %v899, 4
        %v901 = vrot.slane %v664, 5
        %v902 = vsel %vm459, %v900, %v901
        %s903 = scalar_lea.vmem %s1, 40
        %v904 = vld [vmem:[%s903] sm:$0xf]
        %v905 = vld [vmem:[%s903 + $0x4] sm:$0xf]
        %v906 = vunpack.c.l.b16 %v874
        %v907 = vunpack.c.l.b16 %v878
        %v908 = vunpack.c.l.b16 %v882
        %v909 = vunpack.c.l.b16 %v886
        %v910 = vunpack.c.l.b16 %v890
        %v911 = vunpack.c.l.b16 %v894
        %v912 = vunpack.c.l.b16 %v898
        %v913 = vunpack.c.l.b16 %v902
        %v914 = vpack.c.b16 %v907, %v906
        %v915 = vpack.c.b16 %v909, %v908
        %v916 = vpack.c.b16 %v911, %v910
        %v917 = vpack.c.b16 %v913, %v912
        %v920 = vunpack.c.l.b16 %v904
        %v921 = vunpack.c.l.b16 %v905
        %v922 = vpack.c.b16 %v921, %v920
        %v925 = vsel %vm324, %v914, 0
        %v928 = vsel %vm324, %v915, 0
        %v931 = vsel %vm324, %v916, 0
        %v934 = vsel %vm324, %v917, 0
        %936 = vmatpush.bf16.msra.mxu0 0
        %937 = vmatpush.bf16.msra.mxu0 0
        %938 = vmatpush.bf16.msra.mxu0 0
        %939 = vmatpush.bf16.msra.mxu0 0
        %940 = vmatpush.bf16.msra.mxu0 0
        %941 = vmatpush.bf16.msra.mxu0 0
        %942 = vmatpush.bf16.msra.mxu0 0
        %943 = vmatpush.bf16.msra.mxu0 %v922
        %944 = vmatmul.bf16.gmra.mxu0 %v925
        %v945 = vpop.f32.mrf.mxu0
        %v946 = vadd.f32 0.0, %v945
        %v947 = vpop.f32.mrf.mxu0
        %v948 = vadd.f32 0.0, %v947
        %949 = vmatmul.bf16.gmra.mxu0 %v928
        %v950 = vpop.f32.mrf.mxu0
        %v951 = vadd.f32 0.0, %v950
        %v952 = vpop.f32.mrf.mxu0
        %v953 = vadd.f32 0.0, %v952
        %954 = vmatmul.bf16.gmra.mxu0 %v931
        %v955 = vpop.f32.mrf.mxu0
        %v956 = vadd.f32 0.0, %v955
        %v957 = vpop.f32.mrf.mxu0
        %v958 = vadd.f32 0.0, %v957
        %959 = vmatmul.bf16.gmra.mxu0 %v934
        %v960 = vpop.f32.mrf.mxu0
        %v961 = vadd.f32 0.0, %v960
        %v962 = vpop.f32.mrf.mxu0
        %v963 = vadd.f32 0.0, %v962
        %964 = vdwg.mxu0
        %v965 = vadd.f32 %v839, %v946
        %v966 = vadd.f32 %v840, %v948
        %v967 = vadd.f32 %v841, %v951
        %v968 = vadd.f32 %v842, %v953
        %v969 = vadd.f32 %v843, %v956
        %v970 = vadd.f32 %v844, %v958
        %v971 = vadd.f32 %v845, %v961
        %v972 = vadd.f32 %v846, %v963
        %s973 = scalar_lea.vmem %s168, 16
        %v974 = vld [vmem:[%s973] sm:$0xf]
        %v975 = vld [vmem:[%s973 + $0x8] sm:$0xf]
        %v976 = vld [vmem:[%s973 + $0x10] sm:$0xf]
        %v977 = vld [vmem:[%s973 + $0x18] sm:$0xf]
        %v978 = vld [vmem:[%s973 + $0x20] sm:$0xf]
        %v979 = vld [vmem:[%s973 + $0x28] sm:$0xf]
        %v980 = vld [vmem:[%s973 + $0x30] sm:$0xf]
        %v981 = vld [vmem:[%s973 + $0x38] sm:$0xf]
        %s982 = scalar_lea.vmem %s1, 48
        %v983 = vld [vmem:[%s982] sm:$0xf]
        %v984 = vld [vmem:[%s982 + $0x4] sm:$0xf]
        %v993 = vunpack.c.l.b16 %v974
        %v994 = vunpack.c.l.b16 %v975
        %v995 = vunpack.c.l.b16 %v976
        %v996 = vunpack.c.l.b16 %v977
        %v997 = vunpack.c.l.b16 %v978
        %v998 = vunpack.c.l.b16 %v979
        %v999 = vunpack.c.l.b16 %v980
        %v1000 = vunpack.c.l.b16 %v981
        %v1001 = vpack.c.b16 %v994, %v993
        %v1002 = vpack.c.b16 %v996, %v995
        %v1003 = vpack.c.b16 %v998, %v997
        %v1004 = vpack.c.b16 %v1000, %v999
        %v1007 = vunpack.c.l.b16 %v983
        %v1008 = vunpack.c.l.b16 %v984
        %v1009 = vpack.c.b16 %v1008, %v1007
        %v1012 = vsel %vm324, %v1001, 0
        %v1015 = vsel %vm324, %v1002, 0
        %v1018 = vsel %vm324, %v1003, 0
        %v1021 = vsel %vm324, %v1004, 0
        %1023 = vmatpush.bf16.msra.mxu0 0
        %1024 = vmatpush.bf16.msra.mxu0 0
        %1025 = vmatpush.bf16.msra.mxu0 0
        %1026 = vmatpush.bf16.msra.mxu0 0
        %1027 = vmatpush.bf16.msra.mxu0 0
        %1028 = vmatpush.bf16.msra.mxu0 0
        %1029 = vmatpush.bf16.msra.mxu0 0
        %1030 = vmatpush.bf16.msra.mxu0 %v1009
        %1031 = vmatmul.bf16.gmra.mxu0 %v1012
        %v1032 = vpop.f32.mrf.mxu0
        %v1033 = vadd.f32 0.0, %v1032
        %v1034 = vpop.f32.mrf.mxu0
        %v1035 = vadd.f32 0.0, %v1034
        %1036 = vmatmul.bf16.gmra.mxu0 %v1015
        %v1037 = vpop.f32.mrf.mxu0
        %v1038 = vadd.f32 0.0, %v1037
        %v1039 = vpop.f32.mrf.mxu0
        %v1040 = vadd.f32 0.0, %v1039
        %1041 = vmatmul.bf16.gmra.mxu0 %v1018
        %v1042 = vpop.f32.mrf.mxu0
        %v1043 = vadd.f32 0.0, %v1042
        %v1044 = vpop.f32.mrf.mxu0
        %v1045 = vadd.f32 0.0, %v1044
        %1046 = vmatmul.bf16.gmra.mxu0 %v1021
        %v1047 = vpop.f32.mrf.mxu0
        %v1048 = vadd.f32 0.0, %v1047
        %v1049 = vpop.f32.mrf.mxu0
        %v1050 = vadd.f32 0.0, %v1049
        %1051 = vdwg.mxu0
        %v1052 = vadd.f32 %v965, %v1033
        %v1053 = vadd.f32 %v966, %v1035
        %v1054 = vadd.f32 %v967, %v1038
        %v1055 = vadd.f32 %v968, %v1040
        %v1056 = vadd.f32 %v969, %v1043
        %v1057 = vadd.f32 %v970, %v1045
        %v1058 = vadd.f32 %v971, %v1048
        %v1059 = vadd.f32 %v972, %v1050
        %v1060 = vld [vmem:[%s973] sm:$0xf]
        %v1061 = vld [vmem:[%s973 + $0x4] sm:$0x1]
        %v1062 = vld [vmem:[%s973 + $0x8] sm:$0xf]
        %v1063 = vld [vmem:[%s973 + $0xc] sm:$0x1]
        %v1064 = vld [vmem:[%s973 + $0x10] sm:$0xf]
        %v1065 = vld [vmem:[%s973 + $0x14] sm:$0x1]
        %v1066 = vld [vmem:[%s973 + $0x18] sm:$0xf]
        %v1067 = vld [vmem:[%s973 + $0x1c] sm:$0x1]
        %v1068 = vld [vmem:[%s973 + $0x20] sm:$0xf]
        %v1069 = vld [vmem:[%s973 + $0x24] sm:$0x1]
        %v1070 = vld [vmem:[%s973 + $0x28] sm:$0xf]
        %v1071 = vld [vmem:[%s973 + $0x2c] sm:$0x1]
        %v1072 = vld [vmem:[%s973 + $0x30] sm:$0xf]
        %v1073 = vld [vmem:[%s973 + $0x34] sm:$0x1]
        %v1074 = vld [vmem:[%s973 + $0x38] sm:$0xf]
        %v1075 = vld [vmem:[%s973 + $0x3c] sm:$0x1]
        %v1077 = vshrl.u32 %v1060, 16
        %v1079 = vrot.slane %v1077, 4
        %v1080 = vshll.u32 %v1060, 16
        %v1082 = vrot.slane %v1080, 5
        %v1083 = vor.u32 %v1079, %v1082
        %v1084 = vrot.slane %v1083, 4
        %v1086 = vshll.u32 %v1061, 16
        %v1088 = vrot.slane %v1086, 5
        %v1089 = vsel %vm190, %v1084, %v1088
        %v1091 = vshrl.u32 %v1062, 16
        %v1093 = vrot.slane %v1091, 4
        %v1094 = vshll.u32 %v1062, 16
        %v1096 = vrot.slane %v1094, 5
        %v1097 = vor.u32 %v1093, %v1096
        %v1098 = vrot.slane %v1097, 4
        %v1100 = vshll.u32 %v1063, 16
        %v1102 = vrot.slane %v1100, 5
        %v1103 = vsel %vm190, %v1098, %v1102
        %v1105 = vshrl.u32 %v1064, 16
        %v1107 = vrot.slane %v1105, 4
        %v1108 = vshll.u32 %v1064, 16
        %v1110 = vrot.slane %v1108, 5
        %v1111 = vor.u32 %v1107, %v1110
        %v1112 = vrot.slane %v1111, 4
        %v1114 = vshll.u32 %v1065, 16
        %v1116 = vrot.slane %v1114, 5
        %v1117 = vsel %vm190, %v1112, %v1116
        %v1119 = vshrl.u32 %v1066, 16
        %v1121 = vrot.slane %v1119, 4
        %v1122 = vshll.u32 %v1066, 16
        %v1124 = vrot.slane %v1122, 5
        %v1125 = vor.u32 %v1121, %v1124
        %v1126 = vrot.slane %v1125, 4
        %v1128 = vshll.u32 %v1067, 16
        %v1130 = vrot.slane %v1128, 5
        %v1131 = vsel %vm190, %v1126, %v1130
        %v1133 = vshrl.u32 %v1068, 16
        %v1135 = vrot.slane %v1133, 4
        %v1136 = vshll.u32 %v1068, 16
        %v1138 = vrot.slane %v1136, 5
        %v1139 = vor.u32 %v1135, %v1138
        %v1140 = vrot.slane %v1139, 4
        %v1142 = vshll.u32 %v1069, 16
        %v1144 = vrot.slane %v1142, 5
        %v1145 = vsel %vm190, %v1140, %v1144
        %v1147 = vshrl.u32 %v1070, 16
        %v1149 = vrot.slane %v1147, 4
        %v1150 = vshll.u32 %v1070, 16
        %v1152 = vrot.slane %v1150, 5
        %v1153 = vor.u32 %v1149, %v1152
        %v1154 = vrot.slane %v1153, 4
        %v1156 = vshll.u32 %v1071, 16
        %v1158 = vrot.slane %v1156, 5
        %v1159 = vsel %vm190, %v1154, %v1158
        %v1161 = vshrl.u32 %v1072, 16
        %v1163 = vrot.slane %v1161, 4
        %v1164 = vshll.u32 %v1072, 16
        %v1166 = vrot.slane %v1164, 5
        %v1167 = vor.u32 %v1163, %v1166
        %v1168 = vrot.slane %v1167, 4
        %v1170 = vshll.u32 %v1073, 16
        %v1172 = vrot.slane %v1170, 5
        %v1173 = vsel %vm190, %v1168, %v1172
        %v1175 = vshrl.u32 %v1074, 16
        %v1177 = vrot.slane %v1175, 4
        %v1178 = vshll.u32 %v1074, 16
        %v1180 = vrot.slane %v1178, 5
        %v1181 = vor.u32 %v1177, %v1180
        %v1182 = vrot.slane %v1181, 4
        %v1184 = vshll.u32 %v1075, 16
        %v1186 = vrot.slane %v1184, 5
        %v1187 = vsel %vm190, %v1182, %v1186
        %s1188 = scalar_lea.vmem %s1, 56
        %v1189 = vld [vmem:[%s1188] sm:$0xf]
        %v1190 = vld [vmem:[%s1188 + $0x4] sm:$0xf]
        %v1191 = vunpack.c.l.b16 %v1089
        %v1192 = vunpack.c.l.b16 %v1103
        %v1193 = vunpack.c.l.b16 %v1117
        %v1194 = vunpack.c.l.b16 %v1131
        %v1195 = vunpack.c.l.b16 %v1145
        %v1196 = vunpack.c.l.b16 %v1159
        %v1197 = vunpack.c.l.b16 %v1173
        %v1198 = vunpack.c.l.b16 %v1187
        %v1199 = vpack.c.b16 %v1192, %v1191
        %v1200 = vpack.c.b16 %v1194, %v1193
        %v1201 = vpack.c.b16 %v1196, %v1195
        %v1202 = vpack.c.b16 %v1198, %v1197
        %v1205 = vunpack.c.l.b16 %v1189
        %v1206 = vunpack.c.l.b16 %v1190
        %v1207 = vpack.c.b16 %v1206, %v1205
        %v1210 = vsel %vm324, %v1199, 0
        %v1213 = vsel %vm324, %v1200, 0
        %v1216 = vsel %vm324, %v1201, 0
        %v1219 = vsel %vm324, %v1202, 0
        %1221 = vmatpush.bf16.msra.mxu0 0
        %1222 = vmatpush.bf16.msra.mxu0 0
        %1223 = vmatpush.bf16.msra.mxu0 0
        %1224 = vmatpush.bf16.msra.mxu0 0
        %1225 = vmatpush.bf16.msra.mxu0 0
        %1226 = vmatpush.bf16.msra.mxu0 0
        %1227 = vmatpush.bf16.msra.mxu0 0
        %1228 = vmatpush.bf16.msra.mxu0 %v1207
        %1229 = vmatmul.bf16.gmra.mxu0 %v1210
        %v1230 = vpop.f32.mrf.mxu0
        %v1231 = vadd.f32 0.0, %v1230
        %v1232 = vpop.f32.mrf.mxu0
        %v1233 = vadd.f32 0.0, %v1232
        %1234 = vmatmul.bf16.gmra.mxu0 %v1213
        %v1235 = vpop.f32.mrf.mxu0
        %v1236 = vadd.f32 0.0, %v1235
        %v1237 = vpop.f32.mrf.mxu0
        %v1238 = vadd.f32 0.0, %v1237
        %1239 = vmatmul.bf16.gmra.mxu0 %v1216
        %v1240 = vpop.f32.mrf.mxu0
        %v1241 = vadd.f32 0.0, %v1240
        %v1242 = vpop.f32.mrf.mxu0
        %v1243 = vadd.f32 0.0, %v1242
        %1244 = vmatmul.bf16.gmra.mxu0 %v1219
        %v1245 = vpop.f32.mrf.mxu0
        %v1246 = vadd.f32 0.0, %v1245
        %v1247 = vpop.f32.mrf.mxu0
        %v1248 = vadd.f32 0.0, %v1247
        %1249 = vdwg.mxu0
        %v1250 = vadd.f32 %v1052, %v1231
        %v1251 = vadd.f32 %v1053, %v1233
        %v1252 = vadd.f32 %v1054, %v1236
        %v1253 = vadd.f32 %v1055, %v1238
        %v1254 = vadd.f32 %v1056, %v1241
        %v1255 = vadd.f32 %v1057, %v1243
        %v1256 = vadd.f32 %v1058, %v1246
        %v1257 = vadd.f32 %v1059, %v1248
        %v1258 = vld [vmem:[%s973] sm:$0xe]
        %v1259 = vld [vmem:[%s973 + $0x8] sm:$0xe]
        %v1260 = vld [vmem:[%s973 + $0x10] sm:$0xe]
        %v1261 = vld [vmem:[%s973 + $0x18] sm:$0xe]
        %v1262 = vld [vmem:[%s973 + $0x20] sm:$0xe]
        %v1263 = vld [vmem:[%s973 + $0x28] sm:$0xe]
        %v1264 = vld [vmem:[%s973 + $0x30] sm:$0xe]
        %v1265 = vld [vmem:[%s973 + $0x38] sm:$0xe]
        %v1282 = vrot.slane %v1258, 5
        %v1283 = vrot.slane %v1282, 4
        %v1284 = vrot.slane %v1061, 5
        %v1285 = vsel %vm459, %v1283, %v1284
        %v1286 = vrot.slane %v1259, 5
        %v1287 = vrot.slane %v1286, 4
        %v1288 = vrot.slane %v1063, 5
        %v1289 = vsel %vm459, %v1287, %v1288
        %v1290 = vrot.slane %v1260, 5
        %v1291 = vrot.slane %v1290, 4
        %v1292 = vrot.slane %v1065, 5
        %v1293 = vsel %vm459, %v1291, %v1292
        %v1294 = vrot.slane %v1261, 5
        %v1295 = vrot.slane %v1294, 4
        %v1296 = vrot.slane %v1067, 5
        %v1297 = vsel %vm459, %v1295, %v1296
        %v1298 = vrot.slane %v1262, 5
        %v1299 = vrot.slane %v1298, 4
        %v1300 = vrot.slane %v1069, 5
        %v1301 = vsel %vm459, %v1299, %v1300
        %v1302 = vrot.slane %v1263, 5
        %v1303 = vrot.slane %v1302, 4
        %v1304 = vrot.slane %v1071, 5
        %v1305 = vsel %vm459, %v1303, %v1304
        %v1306 = vrot.slane %v1264, 5
        %v1307 = vrot.slane %v1306, 4
        %v1308 = vrot.slane %v1073, 5
        %v1309 = vsel %vm459, %v1307, %v1308
        %v1310 = vrot.slane %v1265, 5
        %v1311 = vrot.slane %v1310, 4
        %v1312 = vrot.slane %v1075, 5
        %v1313 = vsel %vm459, %v1311, %v1312
        %s1314 = scalar_lea.vmem %s1, 64
        %v1315 = vld [vmem:[%s1314] sm:$0xf]
        %v1316 = vld [vmem:[%s1314 + $0x4] sm:$0xf]
        %v1317 = vunpack.c.l.b16 %v1285
        %v1318 = vunpack.c.l.b16 %v1289
        %v1319 = vunpack.c.l.b16 %v1293
        %v1320 = vunpack.c.l.b16 %v1297
        %v1321 = vunpack.c.l.b16 %v1301
        %v1322 = vunpack.c.l.b16 %v1305
        %v1323 = vunpack.c.l.b16 %v1309
        %v1324 = vunpack.c.l.b16 %v1313
        %v1325 = vpack.c.b16 %v1318, %v1317
        %v1326 = vpack.c.b16 %v1320, %v1319
        %v1327 = vpack.c.b16 %v1322, %v1321
        %v1328 = vpack.c.b16 %v1324, %v1323
        %v1331 = vunpack.c.l.b16 %v1315
        %v1332 = vunpack.c.l.b16 %v1316
        %v1333 = vpack.c.b16 %v1332, %v1331
        %v1336 = vsel %vm324, %v1325, 0
        %v1339 = vsel %vm324, %v1326, 0
        %v1342 = vsel %vm324, %v1327, 0
        %v1345 = vsel %vm324, %v1328, 0
        %1347 = vmatpush.bf16.msra.mxu0 0
        %1348 = vmatpush.bf16.msra.mxu0 0
        %1349 = vmatpush.bf16.msra.mxu0 0
        %1350 = vmatpush.bf16.msra.mxu0 0
        %1351 = vmatpush.bf16.msra.mxu0 0
        %1352 = vmatpush.bf16.msra.mxu0 0
        %1353 = vmatpush.bf16.msra.mxu0 0
        %1354 = vmatpush.bf16.msra.mxu0 %v1333
        %1355 = vmatmul.bf16.gmra.mxu0 %v1336
        %v1356 = vpop.f32.mrf.mxu0
        %v1357 = vadd.f32 0.0, %v1356
        %v1358 = vpop.f32.mrf.mxu0
        %v1359 = vadd.f32 0.0, %v1358
        %1360 = vmatmul.bf16.gmra.mxu0 %v1339
        %v1361 = vpop.f32.mrf.mxu0
        %v1362 = vadd.f32 0.0, %v1361
        %v1363 = vpop.f32.mrf.mxu0
        %v1364 = vadd.f32 0.0, %v1363
        %1365 = vmatmul.bf16.gmra.mxu0 %v1342
        %v1366 = vpop.f32.mrf.mxu0
        %v1367 = vadd.f32 0.0, %v1366
        %v1368 = vpop.f32.mrf.mxu0
        %v1369 = vadd.f32 0.0, %v1368
        %1370 = vmatmul.bf16.gmra.mxu0 %v1345
        %v1371 = vpop.f32.mrf.mxu0
        %v1372 = vadd.f32 0.0, %v1371
        %v1373 = vpop.f32.mrf.mxu0
        %v1374 = vadd.f32 0.0, %v1373
        %1375 = vdwg.mxu0
        %v1376 = vadd.f32 %v1250, %v1357
        %v1377 = vadd.f32 %v1251, %v1359
        %v1378 = vadd.f32 %v1252, %v1362
        %v1379 = vadd.f32 %v1253, %v1364
        %v1380 = vadd.f32 %v1254, %v1367
        %v1381 = vadd.f32 %v1255, %v1369
        %v1382 = vadd.f32 %v1256, %v1372
        %v1383 = vadd.f32 %v1257, %v1374
        %v1384 = vld [vmem:[%s2] sm:$0x1]
        %v1386 = vperm.slane %v1384, 0
        %v1388 = vadd.f32 %v1376, %v1386
        %v1389 = vadd.f32 %v1377, %v1386
        %v1390 = vadd.f32 %v1378, %v1386
        %v1391 = vadd.f32 %v1379, %v1386
        %v1392 = vadd.f32 %v1380, %v1386
        %v1393 = vadd.f32 %v1381, %v1386
        %v1394 = vadd.f32 %v1382, %v1386
        %v1395 = vadd.f32 %v1383, %v1386
        %vm1396 = vcmask 195584
        %1397 = vst.msk [vmem:[%s163] sm:$0xff] %vm1396, %v1388
        %1398 = vst.msk [vmem:[%s163 + $0x8] sm:$0xff] %vm1396, %v1389
        %1399 = vst.msk [vmem:[%s163 + $0x10] sm:$0xff] %vm1396, %v1390
        %1400 = vst.msk [vmem:[%s163 + $0x18] sm:$0xff] %vm1396, %v1391
        %1401 = vst.msk [vmem:[%s163 + $0x20] sm:$0xff] %vm1396, %v1392
        %1402 = vst.msk [vmem:[%s163 + $0x28] sm:$0xff] %vm1396, %v1393
        %1403 = vst.msk [vmem:[%s163 + $0x30] sm:$0xff] %vm1396, %v1394
        %1404 = vst.msk [vmem:[%s163 + $0x38] sm:$0xff] %vm1396, %v1395
        %s1405 = sand.u32 %s93, 1
        %s1406 = scalar_lea.sflag [#allocation3], %s1405
        %s1407 = sand.u32 %s93, 1
        %s1408 = smul.addr %s1407, 64
        %s1409 = scalar_lea.vmem [#allocation2], %s1408
        // Predicated region
        $region33: #{tpu_custom_call.1} parent=31 // pred_check
          %p1410 = pneg %p103
        $region34: #{tpu_custom_call.1} parent=31 // pred_check_branch
          %1412 = sbr.rel (%p1410) target = $region36
        $region35: #{tpu_custom_call.1} parent=31 // pred_region
          %1414 = vsyncadd %s1406, 0
          %s1415 = smul.addr %s17, 8
          %s1416 = smul.addr %s1415, 8
          %s1417 = scalar_lea.hbm %s3, %s1416
          %s1418 = sshll.u32 %s1409, 4
          %s1419 = int_to_ptr.vmem [resolvable:$true] %s1418
          %s1420 = sshll.u32 %s1417, 4
          %s1421 = int_to_ptr.hbm [resolvable:$true] %s1420
          %1426 = dma.vmem_to_hbm [thread:$0]  %s1419, 1024, %s1421, %s1406, 128, 128, 8
        $region36: #{tpu_custom_call.1} parent=31 // pred_fallthru
          _
      $region32: #{tpu_custom_call.1} parent=5 // pred_fallthru
        _
      %p1427 = scmp.le.s32.totalorder 2, %s12
      // Predicated region
      $region37: #{tpu_custom_call.1} parent=5 // pred_check
        %p1428 = pneg %p1427
      $region38: #{tpu_custom_call.1} parent=5 // pred_check_branch
        %1430 = sbr.rel (%p1428) target = $region40
      $region39: #{tpu_custom_call.1} parent=5 // pred_region
        %s1431 = ssub.s32 %s12, 2
        // Predicated region
        $region41: #{tpu_custom_call.1} parent=39 // pred_check
          %p1432 = pneg %p109
        $region42: #{tpu_custom_call.1} parent=39 // pred_check_branch
          %1434 = sbr.rel (%p1432) target = $region44
        $region43: #{tpu_custom_call.1} parent=39 // pred_region
          %s1435 = sand.u32 %s94, 1
          %s1436 = scalar_lea.sflag [#allocation3], %s1435
          %s1437 = sand.u32 %s94, 1
          %s1438 = smul.addr %s1437, 64
          %s1439 = scalar_lea.vmem [#allocation2], %s1438
          %1441 = dma.done %s1436, 1024
        $region44: #{tpu_custom_call.1} parent=39 // pred_fallthru
          _
      $region40: #{tpu_custom_call.1} parent=5 // pred_fallthru
        _
    $region6: #{tpu_custom_call.1} parent=1 // loop_footer
      %s16 = sadd.s32 1, %s12
    $region7: #{tpu_custom_call.1} parent=1 // loop_footer_branch
      %11 = sbr.rel target = $region3
    $region8: #{tpu_custom_call.1} parent=1 // loop_exit
      _
    %1442 = vsyncpa [#allocation3], 1
    %s1443 = scalar_lea.sflag [#allocation3], 1
    %1444 = vsyncpa %s1443, 1

</llo_original>
